<compile_context>
chip_gen: v7x
topology: tpu7x:2x2x1
jax: 0.10.0
libtpu: 0.0.40
codegen_flags: <defaults>
</compile_context>

<pallas_src>
import math

import jax
import jax.numpy as jnp
from jax import lax
from jax.experimental import pallas as pl
from jax.experimental.pallas import tpu as pltpu


# Output row parity a uses source-row offsets (a-1, a); these groups list which of the
# three 3x3 taps collapse onto each folded offset (same for columns with parity b).
_FOLD_GROUPS = {0: ([0], [1, 2]),   # parity 0: offset -1 <- tap 0 ; offset 0 <- taps 1,2
                1: ([0, 1], [2])}   # parity 1: offset  0 <- taps 0,1 ; offset +1 <- tap 2


def _fold_weights(weight_oihw):
    """OIHW (Cout,Cin,3,3) -> (4,2,2,Cin,Cout) per-parity folded 2x2 weights (f32)."""
    w = jnp.transpose(weight_oihw, (2, 3, 1, 0)).astype(jnp.float32)   # (3,3,Cin,Cout)
    planes = []
    for a in range(2):
        for b in range(2):
            taps = []
            for p in range(2):
                for q in range(2):
                    acc = None
                    for dy in _FOLD_GROUPS[a][p]:
                        for dx in _FOLD_GROUPS[b][q]:
                            acc = w[dy, dx] if acc is None else acc + w[dy, dx]
                    taps.append(acc)
            planes.append(jnp.stack(taps).reshape(2, 2, w.shape[2], w.shape[3]))
    return jnp.stack(planes)                                           # (4,2,2,Cin,Cout)


def _build_conv_weights(weight_oihw, dtype):
    """Kernel weight layout (2, 2, 3*Cin, 2*Cout), indexed [row_parity a][row_tap p].

    K blocks r in {0,1,2} correspond to input column offsets rx = r - 1 (matching the
    in-kernel column-im2col); output columns are [b=0 | b=1] so out[..., b*Cout + c]
    matches the interleaved output layout.  Unused (rx, b) combinations are zero.
    """
    w_eff = _fold_weights(weight_oihw)
    cin, cout = w_eff.shape[3], w_eff.shape[4]
    wk = jnp.zeros((2, 2, 3, cin, 2, cout), jnp.float32)
    for a in range(2):
        for p in range(2):
            for b in range(2):
                for q in range(2):
                    r = b + q          # = (b - 1 + q) + 1
                    wk = wk.at[a, p, r, :, b, :].set(w_eff[2 * a + b, p, q])
    return wk.reshape(2, 2, 3 * cin, 2 * cout).astype(dtype)


def _make_conv_kernel(H, tile_h, W, C):
    """Fused nearest-2x upsample + Conv2d(C, C, 3, 1, 1) for one (batch, H-tile) block."""

    def kernel(x_ref, top_ref, bot_ref, w_ref, b_ref, o_ref):
        # x_ref  : (1, tile_h, W, C)   main rows of this tile
        # top_ref: (1, 1, W, C)        row above the tile (index clamped at 0)
        # bot_ref: (1, 1, W, C)        row below the tile (index clamped at H-1)
        # w_ref  : (2, 2, 3C, 2C)      folded / fused weights
        # b_ref  : (1, 2C)             bias duplicated for both column parities
        # o_ref  : (1, 2*tile_h, W, 2C) interleaved: o[0, 2i+a, j, b*C+c] = y[2i+a, 2j+b, c]
        t = pl.program_id(1)
        xm = x_ref[0]                                            # (tile_h, W, C)
        if H % tile_h:
            # Partial last tile: zero rows past the image (select, so garbage is safe).
            rid = lax.broadcasted_iota(jnp.int32, (tile_h, 1, 1), 0)
            xm = jnp.where(t * tile_h + rid < H, xm, jnp.zeros_like(xm))
        # Halo rows: clamped indices hold real (finite) data, so a 0/1 multiply is safe.
        top = top_ref[0] * (t > 0).astype(xm.dtype)              # (1, W, C)
        bot = bot_ref[0] * ((t + 1) * tile_h < H).astype(xm.dtype)
        slab = jnp.concatenate([top, xm, bot], axis=0)           # (tile_h+2, W, C)

        # Column im2col: xw3[s, j, r*C:(r+1)*C] = slab[s, j + r - 1] (zero outside [0,W)).
        zcol = jnp.zeros((tile_h + 2, 1, C), slab.dtype)
        if W > 1:
            left = jnp.concatenate([zcol, slab[:, :W - 1, :]], axis=1)
            right = jnp.concatenate([slab[:, 1:, :], zcol], axis=1)
        else:
            left = zcol
            right = zcol
        xw3 = jnp.concatenate([left, slab, right], axis=-1)      # (tile_h+2, W, 3C)

        bias = b_ref[...].astype(jnp.float32)                    # (1, 2C)
        rows = []
        for a in range(2):                                       # output row parity
            acc = jnp.zeros((tile_h * W, 2 * C), jnp.float32)
            for p in range(2):                                   # folded row tap
                v = xw3[a + p:a + p + tile_h]                    # contiguous slice
                acc = acc + jnp.dot(v.reshape(tile_h * W, 3 * C), w_ref[a, p],
                                    preferred_element_type=jnp.float32)
            rows.append((acc + bias).reshape(tile_h, W, 2 * C))
        # Interleave the two row parities and do one dense (lane-wide) store.
        tile = jnp.stack(rows, axis=1).reshape(2 * tile_h, W, 2 * C)
        o_ref[0] = tile.astype(o_ref.dtype)

    return kernel


def _upsample_copy_kernel(x_ref, o_ref):
    """Pure nearest-2x upsample, written directly into the interleaved layout."""
    v = x_ref[0]                                          # (tile_h, W, C)
    row = jnp.concatenate([v, v], axis=-1)                # (tile_h, W, 2C)
    tile = jnp.stack([row, row], axis=1)                  # (tile_h, 2, W, 2C)
    o_ref[0] = tile.reshape(o_ref.shape[1], o_ref.shape[2], o_ref.shape[3])


def _vmem_limit_bytes():
    cap = None
    try:
        cap = int(getattr(pltpu.get_tpu_info(), "vmem_capacity_bytes", 0)) or None
    except Exception:
        cap = None
    if cap is None:
        cap = 64 * 1024 * 1024            # conservative (v7x-sized) default
    # Leave headroom for Mosaic internal scratch / semaphores.
    return max(32 * 1024 * 1024, min(cap - 16 * 1024 * 1024, 100 * 1024 * 1024))


def _conv_working_set_bytes(th, W, C, x_isz, w_isz, w_buffers):
    in_blk = th * W * C * x_isz
    halo = 2 * W * C * x_isz
    out_blk = 4 * th * W * C * x_isz
    weights = 24 * C * C * w_isz * w_buffers
    bias = 2 * C * 4 * 2
    slab = (th + 2) * W * C * x_isz
    accs = 2 * (th * W * 2 * C * 4)
    temps = 6 * slab + accs + out_blk                     # slab/left/right/xw3 + accs + tile
    return 2 * (in_blk + halo + out_blk) + weights + bias + temps


def _choose_tile_h(N, H, est_fn, budget):
    """Largest tile_h whose working set fits `budget`; divisors of H preferred."""
    best = None
    for th in range(H, 0, -1):
        if H % th == 0 and est_fn(th) <= budget:
            best = th
            break
    if best is None:
        for th in range(H, 0, -1):
            if est_fn(th) <= budget:
                best = th
                break
    if best is None:
        best = 1
    if N == 1 and best >= H and H >= 2:   # keep both v7x TensorCores busy
        best = (H + 1) // 2
    return best


def upsample_forward_nhwc(x_nhwc, weight_oihw=None, bias=None, *, with_conv=True):
    """Nearest-2x upsample (+ optional fused 3x3 conv).  NHWC in, NHWC out."""
    N, H, W, C = x_nhwc.shape
    dtype = x_nhwc.dtype
    x_isz = jnp.dtype(dtype).itemsize

    vmem_limit = _vmem_limit_bytes()
    budget = int(vmem_limit * 0.6)
    cparams = pltpu.CompilerParams(
        dimension_semantics=("parallel", "parallel"),
        vmem_limit_bytes=vmem_limit)

    if not with_conv:
        def est_copy(th):
            in_blk = th * W * C * x_isz
            out_blk = 4 * th * W * C * x_isz
            return 2 * (in_blk + out_blk) + 3 * out_blk
        tile_h = _choose_tile_h(N, H, est_copy, budget)
        T = pl.cdiv(H, tile_h)
        y4 = pl.pallas_call(
            _upsample_copy_kernel,
            out_shape=jax.ShapeDtypeStruct((N, 2 * H, W, 2 * C), dtype),
            grid_spec=pltpu.PrefetchScalarGridSpec(
                num_scalar_prefetch=0,
                grid=(N, T),
                in_specs=[pl.BlockSpec((1, tile_h, W, C), lambda n, t: (n, t, 0, 0))],
                out_specs=pl.BlockSpec((1, 2 * tile_h, W, 2 * C),
                                       lambda n, t: (n, t, 0, 0)),
            ),
            compiler_params=cparams,
        )(x_nhwc)
        return y4.reshape(N, 2 * H, 2 * W, C)

    if weight_oihw is None or bias is None:
        raise ValueError("with_conv=True requires conv weight and bias.")

    # bf16 activations -> bf16 weights (full MXU rate); f32 otherwise.  f32 accumulation.
    w_dtype = jnp.bfloat16 if dtype == jnp.bfloat16 else jnp.float32
    w_k = _build_conv_weights(weight_oihw, w_dtype)                # (2, 2, 3C, 2C)
    w_isz = jnp.dtype(w_dtype).itemsize
    bias2 = jnp.concatenate([bias, bias]).reshape(1, 2 * C).astype(jnp.float32)

    w_bytes = 24 * C * C * w_isz
    w_single = w_bytes > 2 * 1024 * 1024          # single-buffer large constant weights
    # TODO(synk): add a Cout grid axis (weight / output-channel tiling) for very large C,
    # where the 24*C^2 folded-weight block alone would not fit v7x VMEM.

    def est_conv(th):
        return _conv_working_set_bytes(th, W, C, x_isz, w_isz, 1 if w_single else 2)

    tile_h = _choose_tile_h(N, H, est_conv, budget)
    T = pl.cdiv(H, tile_h)

    w_spec_kwargs = dict(pipeline_mode=pl.Buffered(1)) if w_single else {}
    in_specs = [
        pl.BlockSpec((1, tile_h, W, C), lambda n, t: (n, t, 0, 0)),
        # 1-row H-halos with border-clamped indices (zeroed in-kernel at the edges).
        pl.BlockSpec((1, 1, W, C),
                     lambda n, t: (n, jnp.maximum(t * tile_h - 1, 0), 0, 0)),
        pl.BlockSpec((1, 1, W, C),
                     lambda n, t: (n, jnp.minimum((t + 1) * tile_h, H - 1), 0, 0)),
        pl.BlockSpec((2, 2, 3 * C, 2 * C), lambda n, t: (0, 0, 0, 0), **w_spec_kwargs),
        pl.BlockSpec((1, 2 * C), lambda n, t: (0, 0)),
    ]
    out_spec = pl.BlockSpec((1, 2 * tile_h, W, 2 * C), lambda n, t: (n, t, 0, 0))

    flops = 2 * N * H * W * 4 * (3 * C) * (2 * C)
    bytes_accessed = (N * H * W * C * x_isz
                      + 24 * C * C * w_isz + 8 * C
                      + N * 4 * H * W * C * x_isz)

    y4 = pl.pallas_call(
        _make_conv_kernel(H, tile_h, W, C),
        out_shape=jax.ShapeDtypeStruct((N, 2 * H, W, 2 * C), dtype),
        grid_spec=pltpu.PrefetchScalarGridSpec(
            num_scalar_prefetch=0,
            grid=(N, T),
            in_specs=in_specs,
            out_specs=out_spec,
        ),
        compiler_params=cparams,
        cost_estimate=pl.CostEstimate(flops=int(flops), transcendentals=0,
                                      bytes_accessed=int(bytes_accessed)),
    )(x_nhwc, x_nhwc, x_nhwc, w_k, bias2)

    # (N, 2H, W, 2C) -> (N, 2H, 2W, C) is a contiguous (free) reshape.
    return y4.reshape(N, 2 * H, 2 * W, C)


def upsample_forward(x_nchw, weight_oihw=None, bias=None, *, with_conv=True):
    """PyTorch-style NCHW interface (matches the nn.Module).  Prefer
    `upsample_forward_nhwc` in NHWC pipelines to skip the two transpose HBM passes."""
    y = upsample_forward_nhwc(jnp.transpose(x_nchw, (0, 2, 3, 1)),
                              weight_oihw, bias, with_conv=with_conv)
    return jnp.transpose(y, (0, 3, 1, 2))


def upsample_reference(x_nchw, weight_oihw=None, bias=None, *, with_conv=True):
    up = jnp.repeat(jnp.repeat(x_nchw, 2, axis=2), 2, axis=3)
    if not with_conv:
        return up
    y = lax.conv_general_dilated(
        up, weight_oihw, window_strides=(1, 1), padding=((1, 1), (1, 1)),
        dimension_numbers=("NCHW", "OIHW", "NCHW"))
    return y + bias[None, :, None, None]


if __name__ == "__main__":
    key = jax.random.PRNGKey(0)
    kx, kw, kb = jax.random.split(key, 3)

    N, C, H, W = 2, 4, 16, 16
    x = jax.random.normal(kx, (N, C, H, W), jnp.float32)

    # Deterministic Conv2d(C, C, 3) params (PyTorch-style uniform init bounds).
    fan_in = C * 3 * 3
    bound = 1.0 / math.sqrt(fan_in)
    weight = jax.random.uniform(kw, (C, C, 3, 3), jnp.float32, -bound, bound)   # OIHW
    bias = jax.random.uniform(kb, (C,), jnp.float32, -bound, bound)

    # with_conv=True path (fused upsample + conv)
    y = jax.block_until_ready(upsample_forward(x, weight, bias, with_conv=True))
    y_ref = upsample_reference(x, weight, bias, with_conv=True)
    assert y.shape == (N, C, 2 * H, 2 * W), y.shape
    assert jnp.allclose(y, y_ref, atol=1e-4, rtol=1e-4)

    # with_conv=False path (pure nearest upsample)
    y2 = jax.block_until_ready(upsample_forward(x, with_conv=False))
    y2_ref = upsample_reference(x, with_conv=False)
    assert y2.shape == (N, C, 2 * H, 2 * W), y2.shape
    assert jnp.allclose(y2, y2_ref, atol=1e-6, rtol=1e-6)

    print("KERNEL_OK")
</pallas_src>

<mosaic_0001>
module attributes {stable_mosaic.version = 11 : i64} {
  func.func @kernel(%arg0: i32, %arg1: i32, %arg2: memref<1x16x16x4xf32, #tpu.memory_space<vmem>>, %arg3: memref<1x1x16x4xf32, #tpu.memory_space<vmem>>, %arg4: memref<1x1x16x4xf32, #tpu.memory_space<vmem>>, %arg5: memref<2x2x12x8xf32, #tpu.memory_space<vmem>>, %arg6: memref<1x8xf32, #tpu.memory_space<vmem>>, %arg7: memref<1x32x16x8xf32, #tpu.memory_space<vmem>>) attributes {dimension_semantics = [#tpu.dimension_semantics<parallel>, #tpu.dimension_semantics<parallel>], iteration_bounds = array<i64: 2, 1>, scalar_prefetch = 0 : i64, scratch_operands = 0 : i64, tpu.core_type = #tpu.core_type<tc>, window_params = [{transform_indices = @transform_0, window_bounds = array<i64: 1, 16, 16, 4>}, {transform_indices = @transform_1, window_bounds = array<i64: 1, 1, 16, 4>}, {transform_indices = @transform_2, window_bounds = array<i64: 1, 1, 16, 4>}, {pipeline_mode = #tpu.pipeline_mode<synchronous>, transform_indices = @transform_3, window_bounds = array<i64: 2, 2, 12, 8>}, {pipeline_mode = #tpu.pipeline_mode<synchronous>, transform_indices = @transform_4, window_bounds = array<i64: 1, 8>}, {transform_indices = @transform_5, window_bounds = array<i64: 1, 32, 16, 8>}]} {
    %c0 = arith.constant 0 : index
    %c0_0 = arith.constant 0 : index
    %c0_1 = arith.constant 0 : index
    %c0_2 = arith.constant 0 : index
    %0 = vector.load %arg2[%c0, %c0_0, %c0_1, %c0_2] : memref<1x16x16x4xf32, #tpu.memory_space<vmem>>, vector<1x16x16x4xf32>
    %1 = vector.shape_cast %0 : vector<1x16x16x4xf32> to vector<16x16x4xf32>
    %c0_3 = arith.constant 0 : index
    %c0_4 = arith.constant 0 : index
    %c0_5 = arith.constant 0 : index
    %c0_6 = arith.constant 0 : index
    %2 = vector.load %arg3[%c0_3, %c0_4, %c0_5, %c0_6] : memref<1x1x16x4xf32, #tpu.memory_space<vmem>>, vector<1x1x16x4xf32>
    %3 = vector.shape_cast %2 : vector<1x1x16x4xf32> to vector<1x16x4xf32>
    %c0_i32 = arith.constant 0 : i32
    %4 = arith.cmpi sgt, %arg1, %c0_i32 : i32
    %5 = arith.extui %4 : i1 to i32
    %6 = arith.sitofp %5 : i32 to f32
    %7 = vector.broadcast %6 : f32 to vector<1x16x4xf32>
    %8 = arith.mulf %3, %7 : vector<1x16x4xf32>
    %c0_7 = arith.constant 0 : index
    %c0_8 = arith.constant 0 : index
    %c0_9 = arith.constant 0 : index
    %c0_10 = arith.constant 0 : index
    %9 = vector.load %arg4[%c0_7, %c0_8, %c0_9, %c0_10] : memref<1x1x16x4xf32, #tpu.memory_space<vmem>>, vector<1x1x16x4xf32>
    %10 = vector.shape_cast %9 : vector<1x1x16x4xf32> to vector<1x16x4xf32>
    %c1_i32 = arith.constant 1 : i32
    %11 = arith.addi %arg1, %c1_i32 : i32
    %c16_i32 = arith.constant 16 : i32
    %12 = arith.muli %11, %c16_i32 : i32
    %c16_i32_11 = arith.constant 16 : i32
    %13 = arith.cmpi slt, %12, %c16_i32_11 : i32
    %14 = arith.extui %13 : i1 to i32
    %15 = arith.sitofp %14 : i32 to f32
    %16 = vector.broadcast %15 : f32 to vector<1x16x4xf32>
    %17 = arith.mulf %10, %16 : vector<1x16x4xf32>
    %18 = tpu.concatenate %8, %1, %17 in 0 : vector<1x16x4xf32>, vector<16x16x4xf32>, vector<1x16x4xf32> -> vector<18x16x4xf32>
    %cst = arith.constant 0.000000e+00 : f32
    %19 = vector.broadcast %cst : f32 to vector<18x1x4xf32>
    %20 = vector.extract_strided_slice %18 {offsets = [0, 0, 0], sizes = [18, 15, 4], strides = [1, 1, 1]} : vector<18x16x4xf32> to vector<18x15x4xf32>
    %21 = tpu.concatenate %19, %20 in 1 : vector<18x1x4xf32>, vector<18x15x4xf32> -> vector<18x16x4xf32>
    %22 = vector.extract_strided_slice %18 {offsets = [0, 1, 0], sizes = [18, 15, 4], strides = [1, 1, 1]} : vector<18x16x4xf32> to vector<18x15x4xf32>
    %23 = tpu.concatenate %22, %19 in 1 : vector<18x15x4xf32>, vector<18x1x4xf32> -> vector<18x16x4xf32>
    %24 = tpu.concatenate %21, %18, %23 in 2 : vector<18x16x4xf32>, vector<18x16x4xf32>, vector<18x16x4xf32> -> vector<18x16x12xf32>
    %c0_12 = arith.constant 0 : index
    %c0_13 = arith.constant 0 : index
    %25 = vector.load %arg6[%c0_12, %c0_13] : memref<1x8xf32, #tpu.memory_space<vmem>>, vector<1x8xf32>
    %cst_14 = arith.constant 0.000000e+00 : f32
    %26 = vector.broadcast %cst_14 : f32 to vector<256x8xf32>
    %27 = vector.extract_strided_slice %24 {offsets = [0, 0, 0], sizes = [16, 16, 12], strides = [1, 1, 1]} : vector<18x16x12xf32> to vector<16x16x12xf32>
    %28 = vector.shape_cast %27 : vector<16x16x12xf32> to vector<256x12xf32>
    %c0_15 = arith.constant 0 : index
    %c0_16 = arith.constant 0 : index
    %c0_17 = arith.constant 0 : index
    %c0_18 = arith.constant 0 : index
    %29 = vector.load %arg5[%c0_15, %c0_16, %c0_17, %c0_18] : memref<2x2x12x8xf32, #tpu.memory_space<vmem>>, vector<1x1x12x8xf32>
    %30 = vector.shape_cast %29 : vector<1x1x12x8xf32> to vector<12x8xf32>
    %cst_19 = arith.constant dense<0.000000e+00> : vector<256x8xf32>
    %31 = tpu.matmul %28, %30, %cst_19 {dimension_numbers = #tpu.dot_dimension_numbers<[1], [0], [0], [1], [0, 0, 1, 1], [], []>} : vector<256x12xf32>, vector<12x8xf32>, vector<256x8xf32> -> vector<256x8xf32>
    %32 = arith.addf %26, %31 : vector<256x8xf32>
    %33 = vector.extract_strided_slice %24 {offsets = [1, 0, 0], sizes = [16, 16, 12], strides = [1, 1, 1]} : vector<18x16x12xf32> to vector<16x16x12xf32>
    %34 = vector.shape_cast %33 : vector<16x16x12xf32> to vector<256x12xf32>
    %c0_20 = arith.constant 0 : index
    %c1 = arith.constant 1 : index
    %c0_21 = arith.constant 0 : index
    %c0_22 = arith.constant 0 : index
    %35 = vector.load %arg5[%c0_20, %c1, %c0_21, %c0_22] : memref<2x2x12x8xf32, #tpu.memory_space<vmem>>, vector<1x1x12x8xf32>
    %36 = vector.shape_cast %35 : vector<1x1x12x8xf32> to vector<12x8xf32>
    %cst_23 = arith.constant dense<0.000000e+00> : vector<256x8xf32>
    %37 = tpu.matmul %34, %36, %cst_23 {dimension_numbers = #tpu.dot_dimension_numbers<[1], [0], [0], [1], [0, 0, 1, 1], [], []>} : vector<256x12xf32>, vector<12x8xf32>, vector<256x8xf32> -> vector<256x8xf32>
    %38 = arith.addf %32, %37 : vector<256x8xf32>
    %39 = vector.broadcast %25 : vector<1x8xf32> to vector<256x8xf32>
    %40 = arith.addf %38, %39 : vector<256x8xf32>
    %41 = vector.shape_cast %40 : vector<256x8xf32> to vector<16x16x8xf32>
    %cst_24 = arith.constant 0.000000e+00 : f32
    %42 = vector.broadcast %cst_24 : f32 to vector<256x8xf32>
    %43 = vector.extract_strided_slice %24 {offsets = [1, 0, 0], sizes = [16, 16, 12], strides = [1, 1, 1]} : vector<18x16x12xf32> to vector<16x16x12xf32>
    %44 = vector.shape_cast %43 : vector<16x16x12xf32> to vector<256x12xf32>
    %c1_25 = arith.constant 1 : index
    %c0_26 = arith.constant 0 : index
    %c0_27 = arith.constant 0 : index
    %c0_28 = arith.constant 0 : index
    %45 = vector.load %arg5[%c1_25, %c0_26, %c0_27, %c0_28] : memref<2x2x12x8xf32, #tpu.memory_space<vmem>>, vector<1x1x12x8xf32>
    %46 = vector.shape_cast %45 : vector<1x1x12x8xf32> to vector<12x8xf32>
    %cst_29 = arith.constant dense<0.000000e+00> : vector<256x8xf32>
    %47 = tpu.matmul %44, %46, %cst_29 {dimension_numbers = #tpu.dot_dimension_numbers<[1], [0], [0], [1], [0, 0, 1, 1], [], []>} : vector<256x12xf32>, vector<12x8xf32>, vector<256x8xf32> -> vector<256x8xf32>
    %48 = arith.addf %42, %47 : vector<256x8xf32>
    %49 = vector.extract_strided_slice %24 {offsets = [2, 0, 0], sizes = [16, 16, 12], strides = [1, 1, 1]} : vector<18x16x12xf32> to vector<16x16x12xf32>
    %50 = vector.shape_cast %49 : vector<16x16x12xf32> to vector<256x12xf32>
    %c1_30 = arith.constant 1 : index
    %c1_31 = arith.constant 1 : index
    %c0_32 = arith.constant 0 : index
    %c0_33 = arith.constant 0 : index
    %51 = vector.load %arg5[%c1_30, %c1_31, %c0_32, %c0_33] : memref<2x2x12x8xf32, #tpu.memory_space<vmem>>, vector<1x1x12x8xf32>
    %52 = vector.shape_cast %51 : vector<1x1x12x8xf32> to vector<12x8xf32>
    %cst_34 = arith.constant dense<0.000000e+00> : vector<256x8xf32>
    %53 = tpu.matmul %50, %52, %cst_34 {dimension_numbers = #tpu.dot_dimension_numbers<[1], [0], [0], [1], [0, 0, 1, 1], [], []>} : vector<256x12xf32>, vector<12x8xf32>, vector<256x8xf32> -> vector<256x8xf32>
    %54 = arith.addf %48, %53 : vector<256x8xf32>
    %55 = vector.broadcast %25 : vector<1x8xf32> to vector<256x8xf32>
    %56 = arith.addf %54, %55 : vector<256x8xf32>
    %57 = vector.shape_cast %56 : vector<256x8xf32> to vector<16x16x8xf32>
    %58 = vector.shape_cast %41 : vector<16x16x8xf32> to vector<16x1x16x8xf32>
    %59 = vector.shape_cast %57 : vector<16x16x8xf32> to vector<16x1x16x8xf32>
    %60 = tpu.concatenate %58, %59 in 1 : vector<16x1x16x8xf32>, vector<16x1x16x8xf32> -> vector<16x2x16x8xf32>
    %61 = vector.shape_cast %60 : vector<16x2x16x8xf32> to vector<32x16x8xf32>
    %c0_35 = arith.constant 0 : index
    %c0_36 = arith.constant 0 : index
    %c0_37 = arith.constant 0 : index
    %c0_38 = arith.constant 0 : index
    %62 = vector.load %arg7[%c0_35, %c0_36, %c0_37, %c0_38] : memref<1x32x16x8xf32, #tpu.memory_space<vmem>>, vector<1x32x16x8xf32>
    %63 = vector.shape_cast %62 : vector<1x32x16x8xf32> to vector<32x16x8xf32>
    %64 = vector.shape_cast %61 : vector<32x16x8xf32> to vector<1x32x16x8xf32>
    tpu.vector_store %arg7[%c0_35, %c0_36, %c0_37, %c0_38], %64 {strides = array<i32>} : memref<1x32x16x8xf32, #tpu.memory_space<vmem>>, vector<1x32x16x8xf32>,
    return
  }
  func.func @transform_0(%arg0: i32, %arg1: i32) -> (i32, i32, i32, i32) {
    %c0_i32 = arith.constant 0 : i32
    %c0_i32_0 = arith.constant 0 : i32
    %c0_i32_1 = arith.constant 0 : i32
    return %arg0, %arg1, %c0_i32, %c0_i32_0 : i32, i32, i32, i32
  }
  func.func @transform_1(%arg0: i32, %arg1: i32) -> (i32, i32, i32, i32) {
    %c16_i32 = arith.constant 16 : i32
    %0 = arith.muli %arg1, %c16_i32 : i32
    %c1_i32 = arith.constant 1 : i32
    %1 = arith.subi %0, %c1_i32 : i32
    %c0_i32 = arith.constant 0 : i32
    %2 = arith.maxsi %1, %c0_i32 : i32
    %c0_i32_0 = arith.constant 0 : i32
    %c0_i32_1 = arith.constant 0 : i32
    %c0_i32_2 = arith.constant 0 : i32
    return %arg0, %2, %c0_i32_0, %c0_i32_1 : i32, i32, i32, i32
  }
  func.func @transform_2(%arg0: i32, %arg1: i32) -> (i32, i32, i32, i32) {
    %c1_i32 = arith.constant 1 : i32
    %0 = arith.addi %arg1, %c1_i32 : i32
    %c16_i32 = arith.constant 16 : i32
    %1 = arith.muli %0, %c16_i32 : i32
    %c15_i32 = arith.constant 15 : i32
    %2 = arith.minsi %1, %c15_i32 : i32
    %c0_i32 = arith.constant 0 : i32
    %c0_i32_0 = arith.constant 0 : i32
    %c0_i32_1 = arith.constant 0 : i32
    return %arg0, %2, %c0_i32, %c0_i32_0 : i32, i32, i32, i32
  }
  func.func @transform_3(%arg0: i32, %arg1: i32) -> (i32, i32, i32, i32) {
    %c0_i32 = arith.constant 0 : i32
    %c0_i32_0 = arith.constant 0 : i32
    %c0_i32_1 = arith.constant 0 : i32
    %c0_i32_2 = arith.constant 0 : i32
    %c0_i32_3 = arith.constant 0 : i32
    return %c0_i32, %c0_i32_0, %c0_i32_1, %c0_i32_2 : i32, i32, i32, i32
  }
  func.func @transform_4(%arg0: i32, %arg1: i32) -> (i32, i32) {
    %c0_i32 = arith.constant 0 : i32
    %c0_i32_0 = arith.constant 0 : i32
    %c0_i32_1 = arith.constant 0 : i32
    return %c0_i32, %c0_i32_0 : i32, i32
  }
  func.func @transform_5(%arg0: i32, %arg1: i32) -> (i32, i32, i32, i32) {
    %c0_i32 = arith.constant 0 : i32
    %c0_i32_0 = arith.constant 0 : i32
    %c0_i32_1 = arith.constant 0 : i32
    return %arg0, %arg1, %c0_i32, %c0_i32_0 : i32, i32, i32, i32
  }
}

</mosaic_0001>

<llo_original>
// kernel: tpu_custom_call.1
$region0: #{tpu_custom_call.1}
  #allocation0 [shape = 'u32[]', space=smem, size = 0x4, offset = 0x4, fixed_abs, tag = 'smem constant byte address 0x4 - core index']
  #allocation1 [shape = 'u32[144,128]{1,0:T(1,128)}', space=vmem, size = 0x12000, scoped, tag = 'internal scratch']
  %s0 = inlined_call_operand.vmem [shape: f32[2,16,16,4], index: 0, kind: input, shape index: {}]
  %s1 = inlined_call_operand.vmem [shape: f32[2,16,16,4], index: 1, kind: input, shape index: {}]
  %s2 = inlined_call_operand.vmem [shape: f32[2,16,16,4], index: 2, kind: input, shape index: {}]
  %s3 = inlined_call_operand.vmem [shape: f32[2,2,12,8], index: 3, kind: input, shape index: {}]
  %s4 = inlined_call_operand.vmem [shape: f32[1,8], index: 4, kind: input, shape index: {}]
  %s5 = inlined_call_operand.vmem [shape: f32[2,32,16,8], index: 5, kind: output, shape index: {}]
  %s6 = sld [smem:[#allocation0]]
  $region53: #{tpu_custom_call.1} parent=0
    _
  %s8 = ssub.s32 1, %s6
  %s9 = scalar_select 0, %s8, %s6
  loop: start=0, step=1, limit=4
  $region2: #{tpu_custom_call.1} parent=0 // loop_pre_header
    _
  $region3: #{tpu_custom_call.1} parent=0 // loop_header
    %s11 = sphi 0, %s15
    %p12 = scmp.ge.s32.totalorder %s11, 4
    %s18 = sphi 0, %s30
    %s19 = sphi 0, %s26
    %s20 = sphi 0, %s18
    %s21 = sphi 0, %s19
    %s22 = sphi 0, %s20
    %s23 = sphi 0, %s21
    %s35 = sphi 0, %s37
    %s38 = sphi 0, %s35
    %s39 = sphi 0, %s38
    %s55 = sphi 0, %s39
    %s71 = sphi 0, %s73
    %s74 = sphi 0, %s71
    %s75 = sphi 0, %s74
    %s91 = sphi 0, %s75
    %s107 = sphi 0, %s109
    %s110 = sphi 0, %s107
    %s111 = sphi 0, %s110
    %s127 = sphi 0, %s111
    %s131 = sphi 0, %s131
    %s133 = sphi 0, %s131
    %s134 = sphi 0, %s133
    %s148 = sphi 0, %s134
    %s152 = sphi 0, %s152
    %s154 = sphi 0, %s152
    %s155 = sphi 0, %s154
    %s169 = sphi 0, %s155
    %s177 = sphi 0, %s179
    %s180 = sphi 0, %s177
    %s181 = sphi 0, %s180
    %s197 = sphi 0, %s181
  $region4: #{tpu_custom_call.1} parent=0 // loop_header_branch
    %14 = sbr.rel (%p12) target = $region8
  $region5: #{tpu_custom_call.1} parent=0 // loop_body
    %s16 = ssub.s32 %s11, 1
    %s17 = ssub.s32 %s11, 2
    %s24 = sadd.s32 1, %s19
    %p25 = scmp.ge.s32.totalorder %s24, 1
    %s26 = scalar_select %p25, 0, %s24
    %s27 = sadd.s32 1, %s18
    %s28 = scalar_select %p25, %s27, %s18
    %p29 = scmp.ge.s32.totalorder %s28, 2
    %s30 = scalar_select %p29, 0, %s28
    %s31 = ssub.s32 %s18, %s30
    %s32 = ssub.s32 %s19, %s26
    %s33 = sor.u32 %s31, %s32
    %p34 = scmp.eq.s32.totalorder %s33, 0
    %s36 = sadd.s32 %s35, 1
    %s37 = scalar_select %p34, %s35, %s36
    %p40 = pneg %p34
    %p41 = scmp.eq.s32.totalorder %s11, 1
    %p42 = por %p40, %p41
    %p43 = scmp.ne.s32.totalorder %s35, %s38
    %p44 = scmp.eq.s32.totalorder %s11, 0
    %p45 = por %p43, %p44
    %p46 = scmp.ne.s32.totalorder %s35, %s38
    %p47 = scmp.eq.s32.totalorder %s16, 1
    %p48 = por %p46, %p47
    %p49 = scmp.ne.s32.totalorder %s38, %s39
    %p50 = scmp.eq.s32.totalorder %s16, 0
    %p51 = por %p49, %p50
    %p52 = scmp.ne.s32.totalorder %s38, %s39
    %p53 = scmp.eq.s32.totalorder %s17, 1
    %p54 = por %p52, %p53
    %p56 = scmp.ne.s32.totalorder %s39, %s55
    %p57 = scmp.eq.s32.totalorder %s17, 0
    %p58 = por %p56, %p57
    %s59 = smul.u32 %s19, 16
    %s60 = ssub.s32 %s59, 1
    %p61 = scmp.gt.s32.totalorder %s60, 0
    %s62 = scalar_select %p61, %s60, 0
    %s63 = smul.u32 %s26, 16
    %s64 = ssub.s32 %s63, 1
    %p65 = scmp.gt.s32.totalorder %s64, 0
    %s66 = scalar_select %p65, %s64, 0
    %s67 = ssub.s32 %s18, %s30
    %s68 = ssub.s32 %s62, %s66
    %s69 = sor.u32 %s67, %s68
    %p70 = scmp.eq.s32.totalorder %s69, 0
    %s72 = sadd.s32 %s71, 1
    %s73 = scalar_select %p70, %s71, %s72
    %p76 = pneg %p70
    %p77 = scmp.eq.s32.totalorder %s11, 1
    %p78 = por %p76, %p77
    %p79 = scmp.ne.s32.totalorder %s71, %s74
    %p80 = scmp.eq.s32.totalorder %s11, 0
    %p81 = por %p79, %p80
    %p82 = scmp.ne.s32.totalorder %s71, %s74
    %p83 = scmp.eq.s32.totalorder %s16, 1
    %p84 = por %p82, %p83
    %p85 = scmp.ne.s32.totalorder %s74, %s75
    %p86 = scmp.eq.s32.totalorder %s16, 0
    %p87 = por %p85, %p86
    %p88 = scmp.ne.s32.totalorder %s74, %s75
    %p89 = scmp.eq.s32.totalorder %s17, 1
    %p90 = por %p88, %p89
    %p92 = scmp.ne.s32.totalorder %s75, %s91
    %p93 = scmp.eq.s32.totalorder %s17, 0
    %p94 = por %p92, %p93
    %s95 = sadd.s32 %s19, 1
    %s96 = smul.u32 %s95, 16
    %p97 = scmp.lt.s32.totalorder %s96, 15
    %s98 = scalar_select %p97, %s96, 15
    %s99 = sadd.s32 %s26, 1
    %s100 = smul.u32 %s99, 16
    %p101 = scmp.lt.s32.totalorder %s100, 15
    %s102 = scalar_select %p101, %s100, 15
    %s103 = ssub.s32 %s18, %s30
    %s104 = ssub.s32 %s98, %s102
    %s105 = sor.u32 %s103, %s104
    %p106 = scmp.eq.s32.totalorder %s105, 0
    %s108 = sadd.s32 %s107, 1
    %s109 = scalar_select %p106, %s107, %s108
    %p112 = pneg %p106
    %p113 = scmp.eq.s32.totalorder %s11, 1
    %p114 = por %p112, %p113
    %p115 = scmp.ne.s32.totalorder %s107, %s110
    %p116 = scmp.eq.s32.totalorder %s11, 0
    %p117 = por %p115, %p116
    %p118 = scmp.ne.s32.totalorder %s107, %s110
    %p119 = scmp.eq.s32.totalorder %s16, 1
    %p120 = por %p118, %p119
    %p121 = scmp.ne.s32.totalorder %s110, %s111
    %p122 = scmp.eq.s32.totalorder %s16, 0
    %p123 = por %p121, %p122
    %p124 = scmp.ne.s32.totalorder %s110, %s111
    %p125 = scmp.eq.s32.totalorder %s17, 1
    %p126 = por %p124, %p125
    %p128 = scmp.ne.s32.totalorder %s111, %s127
    %p129 = scmp.eq.s32.totalorder %s17, 0
    %p130 = por %p128, %p129
    %s132 = sadd.s32 %s131, 1
    %p135 = scmp.eq.s32.totalorder %s11, 1
    %p136 = scmp.ne.s32.totalorder %s131, %s133
    %p137 = scmp.eq.s32.totalorder %s11, 0
    %p138 = por %p136, %p137
    %p139 = scmp.ne.s32.totalorder %s131, %s133
    %p140 = scmp.eq.s32.totalorder %s16, 1
    %p141 = por %p139, %p140
    %p142 = scmp.ne.s32.totalorder %s133, %s134
    %p143 = scmp.eq.s32.totalorder %s16, 0
    %p144 = por %p142, %p143
    %p145 = scmp.ne.s32.totalorder %s133, %s134
    %p146 = scmp.eq.s32.totalorder %s17, 1
    %p147 = por %p145, %p146
    %p149 = scmp.ne.s32.totalorder %s134, %s148
    %p150 = scmp.eq.s32.totalorder %s17, 0
    %p151 = por %p149, %p150
    %s153 = sadd.s32 %s152, 1
    %p156 = scmp.eq.s32.totalorder %s11, 1
    %p157 = scmp.ne.s32.totalorder %s152, %s154
    %p158 = scmp.eq.s32.totalorder %s11, 0
    %p159 = por %p157, %p158
    %p160 = scmp.ne.s32.totalorder %s152, %s154
    %p161 = scmp.eq.s32.totalorder %s16, 1
    %p162 = por %p160, %p161
    %p163 = scmp.ne.s32.totalorder %s154, %s155
    %p164 = scmp.eq.s32.totalorder %s16, 0
    %p165 = por %p163, %p164
    %p166 = scmp.ne.s32.totalorder %s154, %s155
    %p167 = scmp.eq.s32.totalorder %s17, 1
    %p168 = por %p166, %p167
    %p170 = scmp.ne.s32.totalorder %s155, %s169
    %p171 = scmp.eq.s32.totalorder %s17, 0
    %p172 = por %p170, %p171
    %s173 = ssub.s32 %s18, %s30
    %s174 = ssub.s32 %s19, %s26
    %s175 = sor.u32 %s173, %s174
    %p176 = scmp.eq.s32.totalorder %s175, 0
    %s178 = sadd.s32 %s177, 1
    %s179 = scalar_select %p176, %s177, %s178
    %p182 = pneg %p176
    %p183 = scmp.eq.s32.totalorder %s11, 1
    %p184 = por %p182, %p183
    %p185 = scmp.ne.s32.totalorder %s177, %s180
    %p186 = scmp.eq.s32.totalorder %s11, 0
    %p187 = por %p185, %p186
    %p188 = scmp.ne.s32.totalorder %s177, %s180
    %p189 = scmp.eq.s32.totalorder %s16, 1
    %p190 = por %p188, %p189
    %p191 = scmp.ne.s32.totalorder %s180, %s181
    %p192 = scmp.eq.s32.totalorder %s16, 0
    %p193 = por %p191, %p192
    %p194 = scmp.ne.s32.totalorder %s180, %s181
    %p195 = scmp.eq.s32.totalorder %s17, 1
    %p196 = por %p194, %p195
    %p198 = scmp.ne.s32.totalorder %s181, %s197
    %p199 = scmp.eq.s32.totalorder %s17, 0
    %p200 = por %p198, %p199
    %p201 = scmp.le.s32.totalorder 1, %s11
    %p202 = scmp.lt.s32.totalorder %s11, 3
    %p203 = pnand %p201, %p202
    %p204 = pneg %p203
    // Predicated region
    $region9: #{tpu_custom_call.1} parent=5 // pred_check
      _
    $region10: #{tpu_custom_call.1} parent=5 // pred_check_branch
      %206 = sbr.rel (%p203) target = $region12
    $region11: #{tpu_custom_call.1} parent=5 // pred_region
      %s207 = ssub.s32 %s11, 1
      // Predicated region
      $region13: #{tpu_custom_call.1} parent=11 // pred_check
        %p208 = pneg %p144
      $region14: #{tpu_custom_call.1} parent=11 // pred_check_branch
        %210 = sbr.rel (%p208) target = $region16
      $region15: #{tpu_custom_call.1} parent=11 // pred_region
        _
      $region16: #{tpu_custom_call.1} parent=11 // pred_fallthru
        _
      // Predicated region
      $region17: #{tpu_custom_call.1} parent=11 // pred_check
        %p211 = pneg %p165
      $region18: #{tpu_custom_call.1} parent=11 // pred_check_branch
        %213 = sbr.rel (%p211) target = $region20
      $region19: #{tpu_custom_call.1} parent=11 // pred_region
        _
      $region20: #{tpu_custom_call.1} parent=11 // pred_fallthru
        _
    $region12: #{tpu_custom_call.1} parent=5 // pred_fallthru
      _
    %p214 = scmp.lt.s32.totalorder %s11, 2
    // Predicated region
    $region21: #{tpu_custom_call.1} parent=5 // pred_check
      %p215 = pneg %p214
    $region22: #{tpu_custom_call.1} parent=5 // pred_check_branch
      %217 = sbr.rel (%p215) target = $region24
    $region23: #{tpu_custom_call.1} parent=5 // pred_region
      // Predicated region
      $region25: #{tpu_custom_call.1} parent=23 // pred_check
        %p218 = pneg %p45
      $region26: #{tpu_custom_call.1} parent=23 // pred_check_branch
        %220 = sbr.rel (%p218) target = $region28
      $region27: #{tpu_custom_call.1} parent=23 // pred_region
        %s221 = smul.u32 16, %s19
        %p222 = scmp.lt.s32.totalorder %s18, 1
        %s223 = scalar_select %p222, %s18, 1
        %p224 = scmp.lt.s32.totalorder %s221, 15
        %s225 = scalar_select %p224, %s221, 15
        %s226 = smul.addr %s225, 2
        %s227 = smul.addr %s223, 32
        %s228 = sadd.s32 %s226, %s227
        %s229 = smul.addr %s228, 8
        %s230 = scalar_lea.vmem %s0, %s229
        %s231 = smul.u32 16, %s19
      $region28: #{tpu_custom_call.1} parent=23 // pred_fallthru
        _
      // Predicated region
      $region29: #{tpu_custom_call.1} parent=23 // pred_check
        %p232 = pneg %p81
      $region30: #{tpu_custom_call.1} parent=23 // pred_check_branch
        %234 = sbr.rel (%p232) target = $region32
      $region31: #{tpu_custom_call.1} parent=23 // pred_region
        %s235 = smul.u32 %s19, 16
        %s236 = ssub.s32 %s235, 1
        %p237 = scmp.gt.s32.totalorder %s236, 0
        %s238 = scalar_select %p237, %s236, 0
        %p239 = scmp.lt.s32.totalorder %s18, 1
        %s240 = scalar_select %p239, %s18, 1
        %p241 = scmp.lt.s32.totalorder %s238, 15
        %s242 = scalar_select %p241, %s238, 15
        %s243 = smul.addr %s242, 2
        %s244 = smul.addr %s240, 32
        %s245 = sadd.s32 %s243, %s244
        %s246 = smul.addr %s245, 8
        %s247 = scalar_lea.vmem %s1, %s246
        %s248 = smul.u32 %s19, 16
        %s249 = ssub.s32 %s248, 1
        %p250 = scmp.gt.s32.totalorder %s249, 0
        %s251 = scalar_select %p250, %s249, 0
      $region32: #{tpu_custom_call.1} parent=23 // pred_fallthru
        _
      // Predicated region
      $region33: #{tpu_custom_call.1} parent=23 // pred_check
        %p252 = pneg %p117
      $region34: #{tpu_custom_call.1} parent=23 // pred_check_branch
        %254 = sbr.rel (%p252) target = $region36
      $region35: #{tpu_custom_call.1} parent=23 // pred_region
        %s255 = sadd.s32 %s19, 1
        %s256 = smul.u32 %s255, 16
        %p257 = scmp.lt.s32.totalorder %s256, 15
        %s258 = scalar_select %p257, %s256, 15
        %p259 = scmp.lt.s32.totalorder %s18, 1
        %s260 = scalar_select %p259, %s18, 1
        %p261 = scmp.lt.s32.totalorder %s258, 15
        %s262 = scalar_select %p261, %s258, 15
        %s263 = smul.addr %s262, 2
        %s264 = smul.addr %s260, 32
        %s265 = sadd.s32 %s263, %s264
        %s266 = smul.addr %s265, 8
        %s267 = scalar_lea.vmem %s2, %s266
        %s268 = sadd.s32 %s19, 1
        %s269 = smul.u32 %s268, 16
        %p270 = scmp.lt.s32.totalorder %s269, 15
        %s271 = scalar_select %p270, %s269, 15
      $region36: #{tpu_custom_call.1} parent=23 // pred_fallthru
        _
    $region24: #{tpu_custom_call.1} parent=5 // pred_fallthru
      _
    %p272 = scmp.le.s32.totalorder 1, %s11
    %p273 = scmp.lt.s32.totalorder %s11, 3
    %p274 = pnand %p272, %p273
    %p275 = pneg %p274
    // Predicated region
    $region37: #{tpu_custom_call.1} parent=5 // pred_check
      _
    $region38: #{tpu_custom_call.1} parent=5 // pred_check_branch
      %277 = sbr.rel (%p274) target = $region40
    $region39: #{tpu_custom_call.1} parent=5 // pred_region
      %s278 = ssub.s32 %s11, 1
      %s279 = smul.u32 16, %s21
      %p280 = scmp.lt.s32.totalorder %s20, 1
      %s281 = scalar_select %p280, %s20, 1
      %p282 = scmp.lt.s32.totalorder %s279, 15
      %s283 = scalar_select %p282, %s279, 15
      %s284 = smul.addr %s283, 2
      %s285 = smul.addr %s281, 32
      %s286 = sadd.s32 %s284, %s285
      %s287 = smul.addr %s286, 8
      %s288 = scalar_lea.vmem %s0, %s287
      %p289 = pneg %p51
      %p290 = pneg %p48
      %s291 = smul.u32 %s21, 16
      %s292 = ssub.s32 %s291, 1
      %p293 = scmp.gt.s32.totalorder %s292, 0
      %s294 = scalar_select %p293, %s292, 0
      %p295 = scmp.lt.s32.totalorder %s20, 1
      %s296 = scalar_select %p295, %s20, 1
      %p297 = scmp.lt.s32.totalorder %s294, 15
      %s298 = scalar_select %p297, %s294, 15
      %s299 = smul.addr %s298, 2
      %s300 = smul.addr %s296, 32
      %s301 = sadd.s32 %s299, %s300
      %s302 = smul.addr %s301, 8
      %s303 = scalar_lea.vmem %s1, %s302
      %p304 = pneg %p87
      %p305 = pneg %p84
      %s306 = sadd.s32 %s21, 1
      %s307 = smul.u32 %s306, 16
      %p308 = scmp.lt.s32.totalorder %s307, 15
      %s309 = scalar_select %p308, %s307, 15
      %p310 = scmp.lt.s32.totalorder %s20, 1
      %s311 = scalar_select %p310, %s20, 1
      %p312 = scmp.lt.s32.totalorder %s309, 15
      %s313 = scalar_select %p312, %s309, 15
      %s314 = smul.addr %s313, 2
      %s315 = smul.addr %s311, 32
      %s316 = sadd.s32 %s314, %s315
      %s317 = smul.addr %s316, 8
      %s318 = scalar_lea.vmem %s2, %s317
      %p319 = pneg %p123
      %p320 = pneg %p120
      %p321 = pneg %p144
      %p322 = pneg %p141
      %p323 = pneg %p165
      %p324 = pneg %p162
      %p325 = pneg %p193
      %p326 = pneg %p190
      %s327 = smul.u32 32, %s21
      %p328 = scmp.lt.s32.totalorder %s20, 1
      %s329 = scalar_select %p328, %s20, 1
      %p330 = scmp.lt.s32.totalorder %s327, 31
      %s331 = scalar_select %p330, %s327, 31
      %s332 = smul.addr %s331, 2
      %s333 = smul.addr %s329, 64
      %s334 = sadd.s32 %s332, %s333
      %s335 = smul.addr %s334, 8
      %s336 = scalar_lea.vmem %s5, %s335
      %s337 = smul.u32 16, %s21
      %p338 = scmp.lt.s32.totalorder %s20, 1
      %s339 = scalar_select %p338, %s20, 1
      %p340 = scmp.lt.s32.totalorder %s337, 15
      %s341 = scalar_select %p340, %s337, 15
      %s342 = smul.addr %s341, 2
      %s343 = smul.addr %s339, 32
      %s344 = sadd.s32 %s342, %s343
      %s345 = smul.addr %s344, 8
      %s346 = scalar_lea.vmem %s0, %s345
      %s347 = smul.u32 16, %s21
      %s348 = smul.u32 %s21, 16
      %s349 = ssub.s32 %s348, 1
      %p350 = scmp.gt.s32.totalorder %s349, 0
      %s351 = scalar_select %p350, %s349, 0
      %p352 = scmp.lt.s32.totalorder %s20, 1
      %s353 = scalar_select %p352, %s20, 1
      %p354 = scmp.lt.s32.totalorder %s351, 15
      %s355 = scalar_select %p354, %s351, 15
      %s356 = smul.addr %s355, 2
      %s357 = smul.addr %s353, 32
      %s358 = sadd.s32 %s356, %s357
      %s359 = smul.addr %s358, 8
      %s360 = scalar_lea.vmem %s1, %s359
      %s361 = smul.u32 %s21, 16
      %s362 = ssub.s32 %s361, 1
      %p363 = scmp.gt.s32.totalorder %s362, 0
      %s364 = scalar_select %p363, %s362, 0
      %s365 = sadd.s32 %s21, 1
      %s366 = smul.u32 %s365, 16
      %p367 = scmp.lt.s32.totalorder %s366, 15
      %s368 = scalar_select %p367, %s366, 15
      %p369 = scmp.lt.s32.totalorder %s20, 1
      %s370 = scalar_select %p369, %s20, 1
      %p371 = scmp.lt.s32.totalorder %s368, 15
      %s372 = scalar_select %p371, %s368, 15
      %s373 = smul.addr %s372, 2
      %s374 = smul.addr %s370, 32
      %s375 = sadd.s32 %s373, %s374
      %s376 = smul.addr %s375, 8
      %s377 = scalar_lea.vmem %s2, %s376
      %s378 = sadd.s32 %s21, 1
      %s379 = smul.u32 %s378, 16
      %p380 = scmp.lt.s32.totalorder %s379, 15
      %s381 = scalar_select %p380, %s379, 15
      %s382 = smul.u32 32, %s21
      %p383 = scmp.lt.s32.totalorder %s20, 1
      %s384 = scalar_select %p383, %s20, 1
      %p385 = scmp.lt.s32.totalorder %s382, 31
      %s386 = scalar_select %p385, %s382, 31
      %s387 = smul.addr %s386, 2
      %s388 = smul.addr %s384, 64
      %s389 = sadd.s32 %s387, %s388
      %s390 = smul.addr %s389, 8
      %s391 = scalar_lea.vmem %s5, %s390
      %s392 = smul.u32 32, %s21
      %v393 = vld [vmem:[%s346] sm:$0xff]
      %v394 = vld [vmem:[%s346 + $0x8] sm:$0xff]
      %v395 = vld [vmem:[%s346 + $0x10] sm:$0xff]
      %v396 = vld [vmem:[%s346 + $0x18] sm:$0xff]
      %v397 = vld [vmem:[%s346 + $0x20] sm:$0xff]
      %v398 = vld [vmem:[%s346 + $0x28] sm:$0xff]
      %v399 = vld [vmem:[%s346 + $0x30] sm:$0xff]
      %v400 = vld [vmem:[%s346 + $0x38] sm:$0xff]
      %v401 = vld [vmem:[%s346 + $0x40] sm:$0xff]
      %v402 = vld [vmem:[%s346 + $0x48] sm:$0xff]
      %v403 = vld [vmem:[%s346 + $0x50] sm:$0xff]
      %v404 = vld [vmem:[%s346 + $0x58] sm:$0xff]
      %v405 = vld [vmem:[%s346 + $0x60] sm:$0xff]
      %v406 = vld [vmem:[%s346 + $0x68] sm:$0xff]
      %v407 = vld [vmem:[%s346 + $0x70] sm:$0xff]
      %v408 = vld [vmem:[%s346 + $0x78] sm:$0xff]
      %v409 = vld [vmem:[%s346 + $0x80] sm:$0xff]
      %v410 = vld [vmem:[%s346 + $0x88] sm:$0xff]
      %v411 = vld [vmem:[%s346 + $0x90] sm:$0xff]
      %v412 = vld [vmem:[%s346 + $0x98] sm:$0xff]
      %v413 = vld [vmem:[%s346 + $0xa0] sm:$0xff]
      %v414 = vld [vmem:[%s346 + $0xa8] sm:$0xff]
      %v415 = vld [vmem:[%s346 + $0xb0] sm:$0xff]
      %v416 = vld [vmem:[%s346 + $0xb8] sm:$0xff]
      %v417 = vld [vmem:[%s346 + $0xc0] sm:$0xff]
      %v418 = vld [vmem:[%s346 + $0xc8] sm:$0xff]
      %v419 = vld [vmem:[%s346 + $0xd0] sm:$0xff]
      %v420 = vld [vmem:[%s346 + $0xd8] sm:$0xff]
      %v421 = vld [vmem:[%s346 + $0xe0] sm:$0xff]
      %v422 = vld [vmem:[%s346 + $0xe8] sm:$0xff]
      %v423 = vld [vmem:[%s346 + $0xf0] sm:$0xff]
      %v424 = vld [vmem:[%s346 + $0xf8] sm:$0xff]
      %v425 = vld [vmem:[%s360] sm:$0xff]
      %v426 = vld [vmem:[%s360 + $0x8] sm:$0xff]
      %p427 = scmp.gt.s32.totalorder %s21, 0
      %s428 = scalar_select %p427, 1, 0
      %s429 = scvt.s32.f32 %s428
      %v430 = vstv %s429
      %v431 = vmul.f32 %v425, %v430
      %v432 = vmul.f32 %v426, %v430
      %v433 = vld [vmem:[%s377] sm:$0xff]
      %v434 = vld [vmem:[%s377 + $0x8] sm:$0xff]
      %s435 = sadd.s32 %s21, 1
      %s436 = smul.u32 %s435, 16
      %p437 = scmp.lt.s32.totalorder %s436, 16
      %s438 = scalar_select %p437, 1, 0
      %s439 = scvt.s32.f32 %s438
      %v440 = vstv %s439
      %v441 = vmul.f32 %v433, %v440
      %v442 = vmul.f32 %v434, %v440
      %vm479 = vcmask 1040384
      %v480 = vrot.slane %v431, 7
      %v481 = vrot.slane %v432, 7
      %v482 = vsel %vm479, %v480, %v481
      %v483 = vrot.slane %v393, 7
      %v484 = vrot.slane %v394, 7
      %v485 = vsel %vm479, %v483, %v484
      %v486 = vrot.slane %v395, 7
      %v487 = vrot.slane %v396, 7
      %v488 = vsel %vm479, %v486, %v487
      %v489 = vrot.slane %v397, 7
      %v490 = vrot.slane %v398, 7
      %v491 = vsel %vm479, %v489, %v490
      %v492 = vrot.slane %v399, 7
      %v493 = vrot.slane %v400, 7
      %v494 = vsel %vm479, %v492, %v493
      %v495 = vrot.slane %v401, 7
      %v496 = vrot.slane %v402, 7
      %v497 = vsel %vm479, %v495, %v496
      %v498 = vrot.slane %v403, 7
      %v499 = vrot.slane %v404, 7
      %v500 = vsel %vm479, %v498, %v499
      %v501 = vrot.slane %v405, 7
      %v502 = vrot.slane %v406, 7
      %v503 = vsel %vm479, %v501, %v502
      %v504 = vrot.slane %v407, 7
      %v505 = vrot.slane %v408, 7
      %v506 = vsel %vm479, %v504, %v505
      %v507 = vrot.slane %v409, 7
      %v508 = vrot.slane %v410, 7
      %v509 = vsel %vm479, %v507, %v508
      %v510 = vrot.slane %v411, 7
      %v511 = vrot.slane %v412, 7
      %v512 = vsel %vm479, %v510, %v511
      %v513 = vrot.slane %v413, 7
      %v514 = vrot.slane %v414, 7
      %v515 = vsel %vm479, %v513, %v514
      %v516 = vrot.slane %v415, 7
      %v517 = vrot.slane %v416, 7
      %v518 = vsel %vm479, %v516, %v517
      %v519 = vrot.slane %v417, 7
      %v520 = vrot.slane %v418, 7
      %v521 = vsel %vm479, %v519, %v520
      %v522 = vrot.slane %v419, 7
      %v523 = vrot.slane %v420, 7
      %v524 = vsel %vm479, %v522, %v523
      %v525 = vrot.slane %v421, 7
      %v526 = vrot.slane %v422, 7
      %v527 = vsel %vm479, %v525, %v526
      %v528 = vrot.slane %v423, 7
      %v529 = vrot.slane %v424, 7
      %v530 = vsel %vm479, %v528, %v529
      %v531 = vrot.slane %v441, 7
      %v532 = vrot.slane %v442, 7
      %v533 = vsel %vm479, %v531, %v532
      %v570 = vsel %vm479, 0.0, %v480
      %v571 = vsel %vm479, 0.0, %v483
      %v572 = vsel %vm479, 0.0, %v486
      %v573 = vsel %vm479, 0.0, %v489
      %v574 = vsel %vm479, 0.0, %v492
      %v575 = vsel %vm479, 0.0, %v495
      %v576 = vsel %vm479, 0.0, %v498
      %v577 = vsel %vm479, 0.0, %v501
      %v578 = vsel %vm479, 0.0, %v504
      %v579 = vsel %vm479, 0.0, %v507
      %v580 = vsel %vm479, 0.0, %v510
      %v581 = vsel %vm479, 0.0, %v513
      %v582 = vsel %vm479, 0.0, %v516
      %v583 = vsel %vm479, 0.0, %v519
      %v584 = vsel %vm479, 0.0, %v522
      %v585 = vsel %vm479, 0.0, %v525
      %v586 = vsel %vm479, 0.0, %v528
      %v587 = vsel %vm479, 0.0, %v531
      %vm588 = vcmask 1046528
      %v589 = vrot.slane %v431, 1
      %v590 = vrot.slane %v432, 1
      %v591 = vsel %vm588, %v589, %v590
      %v592 = vrot.slane %v393, 1
      %v593 = vrot.slane %v394, 1
      %v594 = vsel %vm588, %v592, %v593
      %v595 = vrot.slane %v395, 1
      %v596 = vrot.slane %v396, 1
      %v597 = vsel %vm588, %v595, %v596
      %v598 = vrot.slane %v397, 1
      %v599 = vrot.slane %v398, 1
      %v600 = vsel %vm588, %v598, %v599
      %v601 = vrot.slane %v399, 1
      %v602 = vrot.slane %v400, 1
      %v603 = vsel %vm588, %v601, %v602
      %v604 = vrot.slane %v401, 1
      %v605 = vrot.slane %v402, 1
      %v606 = vsel %vm588, %v604, %v605
      %v607 = vrot.slane %v403, 1
      %v608 = vrot.slane %v404, 1
      %v609 = vsel %vm588, %v607, %v608
      %v610 = vrot.slane %v405, 1
      %v611 = vrot.slane %v406, 1
      %v612 = vsel %vm588, %v610, %v611
      %v613 = vrot.slane %v407, 1
      %v614 = vrot.slane %v408, 1
      %v615 = vsel %vm588, %v613, %v614
      %v616 = vrot.slane %v409, 1
      %v617 = vrot.slane %v410, 1
      %v618 = vsel %vm588, %v616, %v617
      %v619 = vrot.slane %v411, 1
      %v620 = vrot.slane %v412, 1
      %v621 = vsel %vm588, %v619, %v620
      %v622 = vrot.slane %v413, 1
      %v623 = vrot.slane %v414, 1
      %v624 = vsel %vm588, %v622, %v623
      %v625 = vrot.slane %v415, 1
      %v626 = vrot.slane %v416, 1
      %v627 = vsel %vm588, %v625, %v626
      %v628 = vrot.slane %v417, 1
      %v629 = vrot.slane %v418, 1
      %v630 = vsel %vm588, %v628, %v629
      %v631 = vrot.slane %v419, 1
      %v632 = vrot.slane %v420, 1
      %v633 = vsel %vm588, %v631, %v632
      %v634 = vrot.slane %v421, 1
      %v635 = vrot.slane %v422, 1
      %v636 = vsel %vm588, %v634, %v635
      %v637 = vrot.slane %v423, 1
      %v638 = vrot.slane %v424, 1
      %v639 = vsel %vm588, %v637, %v638
      %v640 = vrot.slane %v441, 1
      %v641 = vrot.slane %v442, 1
      %v642 = vsel %vm588, %v640, %v641
      %v661 = vsel %vm588, %v590, 0.0
      %v662 = vsel %vm588, %v593, 0.0
      %v663 = vsel %vm588, %v596, 0.0
      %v664 = vsel %vm588, %v599, 0.0
      %v665 = vsel %vm588, %v602, 0.0
      %v666 = vsel %vm588, %v605, 0.0
      %v667 = vsel %vm588, %v608, 0.0
      %v668 = vsel %vm588, %v611, 0.0
      %v669 = vsel %vm588, %v614, 0.0
      %v670 = vsel %vm588, %v617, 0.0
      %v671 = vsel %vm588, %v620, 0.0
      %v672 = vsel %vm588, %v623, 0.0
      %v673 = vsel %vm588, %v626, 0.0
      %v674 = vsel %vm588, %v629, 0.0
      %v675 = vsel %vm588, %v632, 0.0
      %v676 = vsel %vm588, %v635, 0.0
      %v677 = vsel %vm588, %v638, 0.0
      %v678 = vsel %vm588, %v641, 0.0
      %679 = vrot.lane.b32.xlu0 %v431, 4
      %v680 = vpop.permute.xlu0 %679
      %681 = vrot.lane.b32.xlu0 %v432, 4
      %v682 = vpop.permute.xlu0 %681
      %683 = vrot.lane.b32.xlu0 %v393, 4
      %v684 = vpop.permute.xlu0 %683
      %685 = vrot.lane.b32.xlu0 %v394, 4
      %v686 = vpop.permute.xlu0 %685
      %687 = vrot.lane.b32.xlu0 %v395, 4
      %v688 = vpop.permute.xlu0 %687
      %689 = vrot.lane.b32.xlu0 %v396, 4
      %v690 = vpop.permute.xlu0 %689
      %691 = vrot.lane.b32.xlu0 %v397, 4
      %v692 = vpop.permute.xlu0 %691
      %693 = vrot.lane.b32.xlu0 %v398, 4
      %v694 = vpop.permute.xlu0 %693
      %695 = vrot.lane.b32.xlu0 %v399, 4
      %v696 = vpop.permute.xlu0 %695
      %697 = vrot.lane.b32.xlu0 %v400, 4
      %v698 = vpop.permute.xlu0 %697
      %699 = vrot.lane.b32.xlu0 %v401, 4
      %v700 = vpop.permute.xlu0 %699
      %701 = vrot.lane.b32.xlu0 %v402, 4
      %v702 = vpop.permute.xlu0 %701
      %703 = vrot.lane.b32.xlu0 %v403, 4
      %v704 = vpop.permute.xlu0 %703
      %705 = vrot.lane.b32.xlu0 %v404, 4
      %v706 = vpop.permute.xlu0 %705
      %707 = vrot.lane.b32.xlu0 %v405, 4
      %v708 = vpop.permute.xlu0 %707
      %709 = vrot.lane.b32.xlu0 %v406, 4
      %v710 = vpop.permute.xlu0 %709
      %711 = vrot.lane.b32.xlu0 %v407, 4
      %v712 = vpop.permute.xlu0 %711
      %713 = vrot.lane.b32.xlu0 %v408, 4
      %v714 = vpop.permute.xlu0 %713
      %715 = vrot.lane.b32.xlu0 %v409, 4
      %v716 = vpop.permute.xlu0 %715
      %717 = vrot.lane.b32.xlu0 %v410, 4
      %v718 = vpop.permute.xlu0 %717
      %719 = vrot.lane.b32.xlu0 %v411, 4
      %v720 = vpop.permute.xlu0 %719
      %721 = vrot.lane.b32.xlu0 %v412, 4
      %v722 = vpop.permute.xlu0 %721
      %723 = vrot.lane.b32.xlu0 %v413, 4
      %v724 = vpop.permute.xlu0 %723
      %725 = vrot.lane.b32.xlu0 %v414, 4
      %v726 = vpop.permute.xlu0 %725
      %727 = vrot.lane.b32.xlu0 %v415, 4
      %v728 = vpop.permute.xlu0 %727
      %729 = vrot.lane.b32.xlu0 %v416, 4
      %v730 = vpop.permute.xlu0 %729
      %731 = vrot.lane.b32.xlu0 %v417, 4
      %v732 = vpop.permute.xlu0 %731
      %733 = vrot.lane.b32.xlu0 %v418, 4
      %v734 = vpop.permute.xlu0 %733
      %735 = vrot.lane.b32.xlu0 %v419, 4
      %v736 = vpop.permute.xlu0 %735
      %737 = vrot.lane.b32.xlu0 %v420, 4
      %v738 = vpop.permute.xlu0 %737
      %739 = vrot.lane.b32.xlu0 %v421, 4
      %v740 = vpop.permute.xlu0 %739
      %741 = vrot.lane.b32.xlu0 %v422, 4
      %v742 = vpop.permute.xlu0 %741
      %743 = vrot.lane.b32.xlu0 %v423, 4
      %v744 = vpop.permute.xlu0 %743
      %745 = vrot.lane.b32.xlu0 %v424, 4
      %v746 = vpop.permute.xlu0 %745
      %747 = vrot.lane.b32.xlu0 %v441, 4
      %v748 = vpop.permute.xlu0 %747
      %749 = vrot.lane.b32.xlu0 %v442, 4
      %v750 = vpop.permute.xlu0 %749
      %805 = vrot.lane.b32.xlu0 %v591, 8
      %v806 = vpop.permute.xlu0 %805
      %807 = vrot.lane.b32.xlu0 %v661, 8
      %v808 = vpop.permute.xlu0 %807
      %809 = vrot.lane.b32.xlu0 %v594, 8
      %v810 = vpop.permute.xlu0 %809
      %811 = vrot.lane.b32.xlu0 %v662, 8
      %v812 = vpop.permute.xlu0 %811
      %813 = vrot.lane.b32.xlu0 %v597, 8
      %v814 = vpop.permute.xlu0 %813
      %815 = vrot.lane.b32.xlu0 %v663, 8
      %v816 = vpop.permute.xlu0 %815
      %817 = vrot.lane.b32.xlu0 %v600, 8
      %v818 = vpop.permute.xlu0 %817
      %819 = vrot.lane.b32.xlu0 %v664, 8
      %v820 = vpop.permute.xlu0 %819
      %821 = vrot.lane.b32.xlu0 %v603, 8
      %v822 = vpop.permute.xlu0 %821
      %823 = vrot.lane.b32.xlu0 %v665, 8
      %v824 = vpop.permute.xlu0 %823
      %825 = vrot.lane.b32.xlu0 %v606, 8
      %v826 = vpop.permute.xlu0 %825
      %827 = vrot.lane.b32.xlu0 %v666, 8
      %v828 = vpop.permute.xlu0 %827
      %829 = vrot.lane.b32.xlu0 %v609, 8
      %v830 = vpop.permute.xlu0 %829
      %831 = vrot.lane.b32.xlu0 %v667, 8
      %v832 = vpop.permute.xlu0 %831
      %833 = vrot.lane.b32.xlu0 %v612, 8
      %v834 = vpop.permute.xlu0 %833
      %835 = vrot.lane.b32.xlu0 %v668, 8
      %v836 = vpop.permute.xlu0 %835
      %837 = vrot.lane.b32.xlu0 %v615, 8
      %v838 = vpop.permute.xlu0 %837
      %839 = vrot.lane.b32.xlu0 %v669, 8
      %v840 = vpop.permute.xlu0 %839
      %841 = vrot.lane.b32.xlu0 %v618, 8
      %v842 = vpop.permute.xlu0 %841
      %843 = vrot.lane.b32.xlu0 %v670, 8
      %v844 = vpop.permute.xlu0 %843
      %845 = vrot.lane.b32.xlu0 %v621, 8
      %v846 = vpop.permute.xlu0 %845
      %847 = vrot.lane.b32.xlu0 %v671, 8
      %v848 = vpop.permute.xlu0 %847
      %849 = vrot.lane.b32.xlu0 %v624, 8
      %v850 = vpop.permute.xlu0 %849
      %851 = vrot.lane.b32.xlu0 %v672, 8
      %v852 = vpop.permute.xlu0 %851
      %853 = vrot.lane.b32.xlu0 %v627, 8
      %v854 = vpop.permute.xlu0 %853
      %855 = vrot.lane.b32.xlu0 %v673, 8
      %v856 = vpop.permute.xlu0 %855
      %857 = vrot.lane.b32.xlu0 %v630, 8
      %v858 = vpop.permute.xlu0 %857
      %859 = vrot.lane.b32.xlu0 %v674, 8
      %v860 = vpop.permute.xlu0 %859
      %861 = vrot.lane.b32.xlu0 %v633, 8
      %v862 = vpop.permute.xlu0 %861
      %863 = vrot.lane.b32.xlu0 %v675, 8
      %v864 = vpop.permute.xlu0 %863
      %865 = vrot.lane.b32.xlu0 %v636, 8
      %v866 = vpop.permute.xlu0 %865
      %867 = vrot.lane.b32.xlu0 %v676, 8
      %v868 = vpop.permute.xlu0 %867
      %869 = vrot.lane.b32.xlu0 %v639, 8
      %v870 = vpop.permute.xlu0 %869
      %871 = vrot.lane.b32.xlu0 %v677, 8
      %v872 = vpop.permute.xlu0 %871
      %873 = vrot.lane.b32.xlu0 %v642, 8
      %v874 = vpop.permute.xlu0 %873
      %875 = vrot.lane.b32.xlu0 %v678, 8
      %v876 = vpop.permute.xlu0 %875
      %vm913 = vcmask 31744
      %v914 = vsel %vm913, %v570, %v680
      %v915 = vsel %vm913, %v482, %v682
      %v916 = vsel %vm913, %v571, %v684
      %v917 = vsel %vm913, %v485, %v686
      %v918 = vsel %vm913, %v572, %v688
      %v919 = vsel %vm913, %v488, %v690
      %v920 = vsel %vm913, %v573, %v692
      %v921 = vsel %vm913, %v491, %v694
      %v922 = vsel %vm913, %v574, %v696
      %v923 = vsel %vm913, %v494, %v698
      %v924 = vsel %vm913, %v575, %v700
      %v925 = vsel %vm913, %v497, %v702
      %v926 = vsel %vm913, %v576, %v704
      %v927 = vsel %vm913, %v500, %v706
      %v928 = vsel %vm913, %v577, %v708
      %v929 = vsel %vm913, %v503, %v710
      %v930 = vsel %vm913, %v578, %v712
      %v931 = vsel %vm913, %v506, %v714
      %v932 = vsel %vm913, %v579, %v716
      %v933 = vsel %vm913, %v509, %v718
      %v934 = vsel %vm913, %v580, %v720
      %v935 = vsel %vm913, %v512, %v722
      %v936 = vsel %vm913, %v581, %v724
      %v937 = vsel %vm913, %v515, %v726
      %v938 = vsel %vm913, %v582, %v728
      %v939 = vsel %vm913, %v518, %v730
      %v940 = vsel %vm913, %v583, %v732
      %v941 = vsel %vm913, %v521, %v734
      %v942 = vsel %vm913, %v584, %v736
      %v943 = vsel %vm913, %v524, %v738
      %v944 = vsel %vm913, %v585, %v740
      %v945 = vsel %vm913, %v527, %v742
      %v946 = vsel %vm913, %v586, %v744
      %v947 = vsel %vm913, %v530, %v746
      %v948 = vsel %vm913, %v587, %v748
      %v949 = vsel %vm913, %v533, %v750
      %vm950 = vcmask 64512
      %v951 = vsel %vm950, %v914, %v806
      %v952 = vsel %vm950, %v915, %v808
      %v953 = vsel %vm950, %v916, %v810
      %v954 = vsel %vm950, %v917, %v812
      %v955 = vsel %vm950, %v918, %v814
      %v956 = vsel %vm950, %v919, %v816
      %v957 = vsel %vm950, %v920, %v818
      %v958 = vsel %vm950, %v921, %v820
      %v959 = vsel %vm950, %v922, %v822
      %v960 = vsel %vm950, %v923, %v824
      %v961 = vsel %vm950, %v924, %v826
      %v962 = vsel %vm950, %v925, %v828
      %v963 = vsel %vm950, %v926, %v830
      %v964 = vsel %vm950, %v927, %v832
      %v965 = vsel %vm950, %v928, %v834
      %v966 = vsel %vm950, %v929, %v836
      %v967 = vsel %vm950, %v930, %v838
      %v968 = vsel %vm950, %v931, %v840
      %v969 = vsel %vm950, %v932, %v842
      %v970 = vsel %vm950, %v933, %v844
      %v971 = vsel %vm950, %v934, %v846
      %v972 = vsel %vm950, %v935, %v848
      %v973 = vsel %vm950, %v936, %v850
      %v974 = vsel %vm950, %v937, %v852
      %v975 = vsel %vm950, %v938, %v854
      %v976 = vsel %vm950, %v939, %v856
      %v977 = vsel %vm950, %v940, %v858
      %v978 = vsel %vm950, %v941, %v860
      %v979 = vsel %vm950, %v942, %v862
      %v980 = vsel %vm950, %v943, %v864
      %v981 = vsel %vm950, %v944, %v866
      %v982 = vsel %vm950, %v945, %v868
      %v983 = vsel %vm950, %v946, %v870
      %v984 = vsel %vm950, %v947, %v872
      %v985 = vsel %vm950, %v948, %v874
      %v986 = vsel %vm950, %v949, %v876
      %v987 = vld [vmem:[%s4] sm:$0x1]
      %v988 = vld [vmem:[%s3] sm:$0xff]
      %v989 = vld [vmem:[%s3 + $0x8] sm:$0xf]
      %s990 = scalar_lea.vmem %s3, 16
      %v991 = vld [vmem:[%s990] sm:$0xff]
      %v992 = vld [vmem:[%s990 + $0x8] sm:$0xf]
      %vm993 = vcmask 97280
      %v995 = vsel %vm993, %v953, 0
      %v998 = vsel %vm993, %v954, 0
      %v1001 = vsel %vm993, %v955, 0
      %v1004 = vsel %vm993, %v956, 0
      %v1007 = vsel %vm993, %v957, 0
      %v1010 = vsel %vm993, %v958, 0
      %v1013 = vsel %vm993, %v959, 0
      %v1016 = vsel %vm993, %v960, 0
      %v1019 = vsel %vm993, %v961, 0
      %v1022 = vsel %vm993, %v962, 0
      %v1025 = vsel %vm993, %v963, 0
      %v1028 = vsel %vm993, %v964, 0
      %v1031 = vsel %vm993, %v965, 0
      %v1034 = vsel %vm993, %v966, 0
      %v1037 = vsel %vm993, %v967, 0
      %v1040 = vsel %vm993, %v968, 0
      %v1043 = vsel %vm993, %v969, 0
      %v1046 = vsel %vm993, %v970, 0
      %v1049 = vsel %vm993, %v971, 0
      %v1052 = vsel %vm993, %v972, 0
      %v1055 = vsel %vm993, %v973, 0
      %v1058 = vsel %vm993, %v974, 0
      %v1061 = vsel %vm993, %v975, 0
      %v1064 = vsel %vm993, %v976, 0
      %v1067 = vsel %vm993, %v977, 0
      %v1070 = vsel %vm993, %v978, 0
      %v1073 = vsel %vm993, %v979, 0
      %v1076 = vsel %vm993, %v980, 0
      %v1079 = vsel %vm993, %v981, 0
      %v1082 = vsel %vm993, %v982, 0
      %v1085 = vsel %vm993, %v983, 0
      %v1088 = vsel %vm993, %v984, 0
      %vm1090 = vcmask 1043456
      %v1092 = vsel %vm1090, %v992, 0
      %1094 = vmatprep.subr.mxu0 0.0
      %1095 = vmatpush1.msra.mxu0 %v991
      %1096 = vmatprep.subr.mxu0 0.0
      %1097 = vmatpush1.msra.mxu0 %v1092
      %1098 = vmatprep.subr.mxu0 0.0
      %1099 = vmatpush1.msra.mxu0 0.0
      %1100 = vmatprep.subr.mxu0 0.0
      %1101 = vmatpush1.msra.mxu0 0.0
      %1102 = vmatprep.subr.mxu0 0.0
      %1103 = vmatpush1.msra.mxu0 0.0
      %1104 = vmatprep.subr.mxu0 0.0
      %1105 = vmatpush1.msra.mxu0 0.0
      %1106 = vmatprep.subr.mxu0 0.0
      %1107 = vmatpush1.msra.mxu0 0.0
      %1108 = vmatprep.subr.mxu0 0.0
      %1109 = vmatpush1.msra.mxu0 0.0
      %1110 = vmatprep.subr.mxu0 0.0
      %1111 = vmatpush1.msra.mxu0 0.0
      %1112 = vmatprep.subr.mxu0 0.0
      %1113 = vmatpush1.msra.mxu0 0.0
      %1114 = vmatprep.subr.mxu0 0.0
      %1115 = vmatpush1.msra.mxu0 0.0
      %1116 = vmatprep.subr.mxu0 0.0
      %1117 = vmatpush1.msra.mxu0 0.0
      %1118 = vmatprep.subr.mxu0 0.0
      %1119 = vmatpush1.msra.mxu0 0.0
      %1120 = vmatprep.subr.mxu0 0.0
      %1121 = vmatpush1.msra.mxu0 0.0
      %1122 = vmatprep.subr.mxu0 0.0
      %1123 = vmatpush1.msra.mxu0 0.0
      %1124 = vmatprep.subr.mxu0 0.0
      %1125 = vmatpush1.msra.mxu0 0.0
      %1126 = vmatprep.subr.mxu0 0.0
      %1127 = vmatpush1.msra.mxu0 0.0
      %1128 = vmatprep.subr.mxu0 0.0
      %1129 = vmatpush1.msra.mxu0 0.0
      %1130 = vmatprep.subr.mxu0 0.0
      %1131 = vmatpush1.msra.mxu0 0.0
      %1132 = vmatprep.subr.mxu0 0.0
      %1133 = vmatpush1.msra.mxu0 0.0
      %1134 = vmatprep.subr.mxu0 0.0
      %1135 = vmatpush1.msra.mxu0 0.0
      %1136 = vmatprep.subr.mxu0 0.0
      %1137 = vmatpush1.msra.mxu0 0.0
      %1138 = vmatprep.subr.mxu0 0.0
      %1139 = vmatpush1.msra.mxu0 0.0
      %1140 = vmatprep.subr.mxu0 0.0
      %1141 = vmatpush1.msra.mxu0 0.0
      %1142 = vmatprep.subr.mxu0 0.0
      %1143 = vmatpush1.msra.mxu0 0.0
      %1144 = vmatprep.subr.mxu0 0.0
      %1145 = vmatpush1.msra.mxu0 0.0
      %1146 = vmatprep.subr.mxu0 0.0
      %1147 = vmatpush1.msra.mxu0 0.0
      %1148 = vmatprep.subr.mxu0 0.0
      %1149 = vmatpush1.msra.mxu0 0.0
      %1150 = vmatprep.subr.mxu0 0.0
      %1151 = vmatpush1.msra.mxu0 0.0
      %1152 = vmatprep.subr.mxu0 0.0
      %1153 = vmatpush1.msra.mxu0 0.0
      %1154 = vmatprep.subr.mxu0 0.0
      %1155 = vmatpush1.msra.mxu0 0.0
      %1156 = vmatprep.subr.mxu0 0.0
      %1157 = vmatpush1.msra.mxu0 0.0
      %1158 = vmatprep.mubr.f32.mxu0 0.0
      %1159 = vmatmul.mubr.f32.gmra.mrb[0].mxu0 %v995
      %v1160 = vpop.f32.mrb[0].mxu0
      %v1161 = vadd.f32 0.0, %v1160
      %v1162 = vpop.f32.mrb[0].mxu0
      %1163 = vmatprep.mubr.f32.mxu0 0.0
      %1164 = vmatmul.mubr.f32.gmra.mrb[0].mxu0 %v998
      %v1165 = vpop.f32.mrb[0].mxu0
      %v1166 = vadd.f32 0.0, %v1165
      %v1167 = vpop.f32.mrb[0].mxu0
      %1168 = vmatprep.mubr.f32.mxu0 0.0
      %1169 = vmatmul.mubr.f32.gmra.mrb[0].mxu0 %v1001
      %v1170 = vpop.f32.mrb[0].mxu0
      %v1171 = vadd.f32 0.0, %v1170
      %v1172 = vpop.f32.mrb[0].mxu0
      %1173 = vmatprep.mubr.f32.mxu0 0.0
      %1174 = vmatmul.mubr.f32.gmra.mrb[0].mxu0 %v1004
      %v1175 = vpop.f32.mrb[0].mxu0
      %v1176 = vadd.f32 0.0, %v1175
      %v1177 = vpop.f32.mrb[0].mxu0
      %1178 = vmatprep.mubr.f32.mxu0 0.0
      %1179 = vmatmul.mubr.f32.gmra.mrb[0].mxu0 %v1007
      %v1180 = vpop.f32.mrb[0].mxu0
      %v1181 = vadd.f32 0.0, %v1180
      %v1182 = vpop.f32.mrb[0].mxu0
      %1183 = vmatprep.mubr.f32.mxu0 0.0
      %1184 = vmatmul.mubr.f32.gmra.mrb[0].mxu0 %v1010
      %v1185 = vpop.f32.mrb[0].mxu0
      %v1186 = vadd.f32 0.0, %v1185
      %v1187 = vpop.f32.mrb[0].mxu0
      %1188 = vmatprep.mubr.f32.mxu0 0.0
      %1189 = vmatmul.mubr.f32.gmra.mrb[0].mxu0 %v1013
      %v1190 = vpop.f32.mrb[0].mxu0
      %v1191 = vadd.f32 0.0, %v1190
      %v1192 = vpop.f32.mrb[0].mxu0
      %1193 = vmatprep.mubr.f32.mxu0 0.0
      %1194 = vmatmul.mubr.f32.gmra.mrb[0].mxu0 %v1016
      %v1195 = vpop.f32.mrb[0].mxu0
      %v1196 = vadd.f32 0.0, %v1195
      %v1197 = vpop.f32.mrb[0].mxu0
      %1198 = vmatprep.mubr.f32.mxu0 0.0
      %1199 = vmatmul.mubr.f32.gmra.mrb[0].mxu0 %v1019
      %v1200 = vpop.f32.mrb[0].mxu0
      %v1201 = vadd.f32 0.0, %v1200
      %v1202 = vpop.f32.mrb[0].mxu0
      %1203 = vmatprep.mubr.f32.mxu0 0.0
      %1204 = vmatmul.mubr.f32.gmra.mrb[0].mxu0 %v1022
      %v1205 = vpop.f32.mrb[0].mxu0
      %v1206 = vadd.f32 0.0, %v1205
      %v1207 = vpop.f32.mrb[0].mxu0
      %1208 = vmatprep.mubr.f32.mxu0 0.0
      %1209 = vmatmul.mubr.f32.gmra.mrb[0].mxu0 %v1025
      %v1210 = vpop.f32.mrb[0].mxu0
      %v1211 = vadd.f32 0.0, %v1210
      %v1212 = vpop.f32.mrb[0].mxu0
      %1213 = vmatprep.mubr.f32.mxu0 0.0
      %1214 = vmatmul.mubr.f32.gmra.mrb[0].mxu0 %v1028
      %v1215 = vpop.f32.mrb[0].mxu0
      %v1216 = vadd.f32 0.0, %v1215
      %v1217 = vpop.f32.mrb[0].mxu0
      %1218 = vmatprep.mubr.f32.mxu0 0.0
      %1219 = vmatmul.mubr.f32.gmra.mrb[0].mxu0 %v1031
      %v1220 = vpop.f32.mrb[0].mxu0
      %v1221 = vadd.f32 0.0, %v1220
      %v1222 = vpop.f32.mrb[0].mxu0
      %1223 = vmatprep.mubr.f32.mxu0 0.0
      %1224 = vmatmul.mubr.f32.gmra.mrb[0].mxu0 %v1034
      %v1225 = vpop.f32.mrb[0].mxu0
      %v1226 = vadd.f32 0.0, %v1225
      %v1227 = vpop.f32.mrb[0].mxu0
      %1228 = vmatprep.mubr.f32.mxu0 0.0
      %1229 = vmatmul.mubr.f32.gmra.mrb[0].mxu0 %v1037
      %v1230 = vpop.f32.mrb[0].mxu0
      %v1231 = vadd.f32 0.0, %v1230
      %v1232 = vpop.f32.mrb[0].mxu0
      %1233 = vmatprep.mubr.f32.mxu0 0.0
      %1234 = vmatmul.mubr.f32.gmra.mrb[0].mxu0 %v1040
      %v1235 = vpop.f32.mrb[0].mxu0
      %v1236 = vadd.f32 0.0, %v1235
      %v1237 = vpop.f32.mrb[0].mxu0
      %1238 = vmatprep.mubr.f32.mxu0 0.0
      %1239 = vmatmul.mubr.f32.gmra.mrb[0].mxu0 %v1043
      %v1240 = vpop.f32.mrb[0].mxu0
      %v1241 = vadd.f32 0.0, %v1240
      %v1242 = vpop.f32.mrb[0].mxu0
      %1243 = vmatprep.mubr.f32.mxu0 0.0
      %1244 = vmatmul.mubr.f32.gmra.mrb[0].mxu0 %v1046
      %v1245 = vpop.f32.mrb[0].mxu0
      %v1246 = vadd.f32 0.0, %v1245
      %v1247 = vpop.f32.mrb[0].mxu0
      %1248 = vmatprep.mubr.f32.mxu0 0.0
      %1249 = vmatmul.mubr.f32.gmra.mrb[0].mxu0 %v1049
      %v1250 = vpop.f32.mrb[0].mxu0
      %v1251 = vadd.f32 0.0, %v1250
      %v1252 = vpop.f32.mrb[0].mxu0
      %1253 = vmatprep.mubr.f32.mxu0 0.0
      %1254 = vmatmul.mubr.f32.gmra.mrb[0].mxu0 %v1052
      %v1255 = vpop.f32.mrb[0].mxu0
      %v1256 = vadd.f32 0.0, %v1255
      %v1257 = vpop.f32.mrb[0].mxu0
      %1258 = vmatprep.mubr.f32.mxu0 0.0
      %1259 = vmatmul.mubr.f32.gmra.mrb[0].mxu0 %v1055
      %v1260 = vpop.f32.mrb[0].mxu0
      %v1261 = vadd.f32 0.0, %v1260
      %v1262 = vpop.f32.mrb[0].mxu0
      %1263 = vmatprep.mubr.f32.mxu0 0.0
      %1264 = vmatmul.mubr.f32.gmra.mrb[0].mxu0 %v1058
      %v1265 = vpop.f32.mrb[0].mxu0
      %v1266 = vadd.f32 0.0, %v1265
      %v1267 = vpop.f32.mrb[0].mxu0
      %1268 = vmatprep.mubr.f32.mxu0 0.0
      %1269 = vmatmul.mubr.f32.gmra.mrb[0].mxu0 %v1061
      %v1270 = vpop.f32.mrb[0].mxu0
      %v1271 = vadd.f32 0.0, %v1270
      %v1272 = vpop.f32.mrb[0].mxu0
      %1273 = vmatprep.mubr.f32.mxu0 0.0
      %1274 = vmatmul.mubr.f32.gmra.mrb[0].mxu0 %v1064
      %v1275 = vpop.f32.mrb[0].mxu0
      %v1276 = vadd.f32 0.0, %v1275
      %v1277 = vpop.f32.mrb[0].mxu0
      %1278 = vmatprep.mubr.f32.mxu0 0.0
      %1279 = vmatmul.mubr.f32.gmra.mrb[0].mxu0 %v1067
      %v1280 = vpop.f32.mrb[0].mxu0
      %v1281 = vadd.f32 0.0, %v1280
      %v1282 = vpop.f32.mrb[0].mxu0
      %1283 = vmatprep.mubr.f32.mxu0 0.0
      %1284 = vmatmul.mubr.f32.gmra.mrb[0].mxu0 %v1070
      %v1285 = vpop.f32.mrb[0].mxu0
      %v1286 = vadd.f32 0.0, %v1285
      %v1287 = vpop.f32.mrb[0].mxu0
      %1288 = vmatprep.mubr.f32.mxu0 0.0
      %1289 = vmatmul.mubr.f32.gmra.mrb[0].mxu0 %v1073
      %v1290 = vpop.f32.mrb[0].mxu0
      %v1291 = vadd.f32 0.0, %v1290
      %v1292 = vpop.f32.mrb[0].mxu0
      %1293 = vmatprep.mubr.f32.mxu0 0.0
      %1294 = vmatmul.mubr.f32.gmra.mrb[0].mxu0 %v1076
      %v1295 = vpop.f32.mrb[0].mxu0
      %v1296 = vadd.f32 0.0, %v1295
      %v1297 = vpop.f32.mrb[0].mxu0
      %1298 = vmatprep.mubr.f32.mxu0 0.0
      %1299 = vmatmul.mubr.f32.gmra.mrb[0].mxu0 %v1079
      %v1300 = vpop.f32.mrb[0].mxu0
      %v1301 = vadd.f32 0.0, %v1300
      %v1302 = vpop.f32.mrb[0].mxu0
      %1303 = vmatprep.mubr.f32.mxu0 0.0
      %1304 = vmatmul.mubr.f32.gmra.mrb[0].mxu0 %v1082
      %v1305 = vpop.f32.mrb[0].mxu0
      %v1306 = vadd.f32 0.0, %v1305
      %v1307 = vpop.f32.mrb[0].mxu0
      %1308 = vmatprep.mubr.f32.mxu0 0.0
      %1309 = vmatmul.mubr.f32.gmra.mrb[0].mxu0 %v1085
      %v1310 = vpop.f32.mrb[0].mxu0
      %v1311 = vadd.f32 0.0, %v1310
      %v1312 = vpop.f32.mrb[0].mxu0
      %1313 = vmatprep.mubr.f32.mxu0 0.0
      %1314 = vmatmul.mubr.f32.gmra.mrb[0].mxu0 %v1088
      %v1315 = vpop.f32.mrb[0].mxu0
      %v1316 = vadd.f32 0.0, %v1315
      %v1317 = vpop.f32.mrb[0].mxu0
      %1318 = vdwg.mxu0
      %v1320 = vsel %vm993, %v951, 0
      %v1323 = vsel %vm993, %v952, 0
      %v1326 = vsel %vm1090, %v989, 0
      %1328 = vmatprep.subr.mxu0 0.0
      %1329 = vmatpush1.msra.mxu0 %v988
      %1330 = vmatprep.subr.mxu0 0.0
      %1331 = vmatpush1.msra.mxu0 %v1326
      %1332 = vmatprep.subr.mxu0 0.0
      %1333 = vmatpush1.msra.mxu0 0.0
      %1334 = vmatprep.subr.mxu0 0.0
      %1335 = vmatpush1.msra.mxu0 0.0
      %1336 = vmatprep.subr.mxu0 0.0
      %1337 = vmatpush1.msra.mxu0 0.0
      %1338 = vmatprep.subr.mxu0 0.0
      %1339 = vmatpush1.msra.mxu0 0.0
      %1340 = vmatprep.subr.mxu0 0.0
      %1341 = vmatpush1.msra.mxu0 0.0
      %1342 = vmatprep.subr.mxu0 0.0
      %1343 = vmatpush1.msra.mxu0 0.0
      %1344 = vmatprep.subr.mxu0 0.0
      %1345 = vmatpush1.msra.mxu0 0.0
      %1346 = vmatprep.subr.mxu0 0.0
      %1347 = vmatpush1.msra.mxu0 0.0
      %1348 = vmatprep.subr.mxu0 0.0
      %1349 = vmatpush1.msra.mxu0 0.0
      %1350 = vmatprep.subr.mxu0 0.0
      %1351 = vmatpush1.msra.mxu0 0.0
      %1352 = vmatprep.subr.mxu0 0.0
      %1353 = vmatpush1.msra.mxu0 0.0
      %1354 = vmatprep.subr.mxu0 0.0
      %1355 = vmatpush1.msra.mxu0 0.0
      %1356 = vmatprep.subr.mxu0 0.0
      %1357 = vmatpush1.msra.mxu0 0.0
      %1358 = vmatprep.subr.mxu0 0.0
      %1359 = vmatpush1.msra.mxu0 0.0
      %1360 = vmatprep.subr.mxu0 0.0
      %1361 = vmatpush1.msra.mxu0 0.0
      %1362 = vmatprep.subr.mxu0 0.0
      %1363 = vmatpush1.msra.mxu0 0.0
      %1364 = vmatprep.subr.mxu0 0.0
      %1365 = vmatpush1.msra.mxu0 0.0
      %1366 = vmatprep.subr.mxu0 0.0
      %1367 = vmatpush1.msra.mxu0 0.0
      %1368 = vmatprep.subr.mxu0 0.0
      %1369 = vmatpush1.msra.mxu0 0.0
      %1370 = vmatprep.subr.mxu0 0.0
      %1371 = vmatpush1.msra.mxu0 0.0
      %1372 = vmatprep.subr.mxu0 0.0
      %1373 = vmatpush1.msra.mxu0 0.0
      %1374 = vmatprep.subr.mxu0 0.0
      %1375 = vmatpush1.msra.mxu0 0.0
      %1376 = vmatprep.subr.mxu0 0.0
      %1377 = vmatpush1.msra.mxu0 0.0
      %1378 = vmatprep.subr.mxu0 0.0
      %1379 = vmatpush1.msra.mxu0 0.0
      %1380 = vmatprep.subr.mxu0 0.0
      %1381 = vmatpush1.msra.mxu0 0.0
      %1382 = vmatprep.subr.mxu0 0.0
      %1383 = vmatpush1.msra.mxu0 0.0
      %1384 = vmatprep.subr.mxu0 0.0
      %1385 = vmatpush1.msra.mxu0 0.0
      %1386 = vmatprep.subr.mxu0 0.0
      %1387 = vmatpush1.msra.mxu0 0.0
      %1388 = vmatprep.subr.mxu0 0.0
      %1389 = vmatpush1.msra.mxu0 0.0
      %1390 = vmatprep.subr.mxu0 0.0
      %1391 = vmatpush1.msra.mxu0 0.0
      %1392 = vmatprep.mubr.f32.mxu0 0.0
      %1393 = vmatmul.mubr.f32.gmra.mrb[0].mxu0 %v1320
      %v1394 = vpop.f32.mrb[0].mxu0
      %v1395 = vadd.f32 %v1161, %v1394
      %v1396 = vpop.f32.mrb[0].mxu0
      %1397 = vmatprep.mubr.f32.mxu0 0.0
      %1398 = vmatmul.mubr.f32.gmra.mrb[0].mxu0 %v1323
      %v1399 = vpop.f32.mrb[0].mxu0
      %v1400 = vadd.f32 %v1166, %v1399
      %v1401 = vpop.f32.mrb[0].mxu0
      %1402 = vmatprep.mubr.f32.mxu0 0.0
      %1403 = vmatmul.mubr.f32.gmra.mrb[0].mxu0 %v995
      %v1404 = vpop.f32.mrb[0].mxu0
      %v1405 = vadd.f32 %v1171, %v1404
      %v1406 = vpop.f32.mrb[0].mxu0
      %1407 = vmatprep.mubr.f32.mxu0 0.0
      %1408 = vmatmul.mubr.f32.gmra.mrb[0].mxu0 %v998
      %v1409 = vpop.f32.mrb[0].mxu0
      %v1410 = vadd.f32 %v1176, %v1409
      %v1411 = vpop.f32.mrb[0].mxu0
      %1412 = vmatprep.mubr.f32.mxu0 0.0
      %1413 = vmatmul.mubr.f32.gmra.mrb[0].mxu0 %v1001
      %v1414 = vpop.f32.mrb[0].mxu0
      %v1415 = vadd.f32 %v1181, %v1414
      %v1416 = vpop.f32.mrb[0].mxu0
      %1417 = vmatprep.mubr.f32.mxu0 0.0
      %1418 = vmatmul.mubr.f32.gmra.mrb[0].mxu0 %v1004
      %v1419 = vpop.f32.mrb[0].mxu0
      %v1420 = vadd.f32 %v1186, %v1419
      %v1421 = vpop.f32.mrb[0].mxu0
      %1422 = vmatprep.mubr.f32.mxu0 0.0
      %1423 = vmatmul.mubr.f32.gmra.mrb[0].mxu0 %v1007
      %v1424 = vpop.f32.mrb[0].mxu0
      %v1425 = vadd.f32 %v1191, %v1424
      %v1426 = vpop.f32.mrb[0].mxu0
      %1427 = vmatprep.mubr.f32.mxu0 0.0
      %1428 = vmatmul.mubr.f32.gmra.mrb[0].mxu0 %v1010
      %v1429 = vpop.f32.mrb[0].mxu0
      %v1430 = vadd.f32 %v1196, %v1429
      %v1431 = vpop.f32.mrb[0].mxu0
      %1432 = vmatprep.mubr.f32.mxu0 0.0
      %1433 = vmatmul.mubr.f32.gmra.mrb[0].mxu0 %v1013
      %v1434 = vpop.f32.mrb[0].mxu0
      %v1435 = vadd.f32 %v1201, %v1434
      %v1436 = vpop.f32.mrb[0].mxu0
      %1437 = vmatprep.mubr.f32.mxu0 0.0
      %1438 = vmatmul.mubr.f32.gmra.mrb[0].mxu0 %v1016
      %v1439 = vpop.f32.mrb[0].mxu0
      %v1440 = vadd.f32 %v1206, %v1439
      %v1441 = vpop.f32.mrb[0].mxu0
      %1442 = vmatprep.mubr.f32.mxu0 0.0
      %1443 = vmatmul.mubr.f32.gmra.mrb[0].mxu0 %v1019
      %v1444 = vpop.f32.mrb[0].mxu0
      %v1445 = vadd.f32 %v1211, %v1444
      %v1446 = vpop.f32.mrb[0].mxu0
      %1447 = vmatprep.mubr.f32.mxu0 0.0
      %1448 = vmatmul.mubr.f32.gmra.mrb[0].mxu0 %v1022
      %v1449 = vpop.f32.mrb[0].mxu0
      %v1450 = vadd.f32 %v1216, %v1449
      %v1451 = vpop.f32.mrb[0].mxu0
      %1452 = vmatprep.mubr.f32.mxu0 0.0
      %1453 = vmatmul.mubr.f32.gmra.mrb[0].mxu0 %v1025
      %v1454 = vpop.f32.mrb[0].mxu0
      %v1455 = vadd.f32 %v1221, %v1454
      %v1456 = vpop.f32.mrb[0].mxu0
      %1457 = vmatprep.mubr.f32.mxu0 0.0
      %1458 = vmatmul.mubr.f32.gmra.mrb[0].mxu0 %v1028
      %v1459 = vpop.f32.mrb[0].mxu0
      %v1460 = vadd.f32 %v1226, %v1459
      %v1461 = vpop.f32.mrb[0].mxu0
      %1462 = vmatprep.mubr.f32.mxu0 0.0
      %1463 = vmatmul.mubr.f32.gmra.mrb[0].mxu0 %v1031
      %v1464 = vpop.f32.mrb[0].mxu0
      %v1465 = vadd.f32 %v1231, %v1464
      %v1466 = vpop.f32.mrb[0].mxu0
      %1467 = vmatprep.mubr.f32.mxu0 0.0
      %1468 = vmatmul.mubr.f32.gmra.mrb[0].mxu0 %v1034
      %v1469 = vpop.f32.mrb[0].mxu0
      %v1470 = vadd.f32 %v1236, %v1469
      %v1471 = vpop.f32.mrb[0].mxu0
      %1472 = vmatprep.mubr.f32.mxu0 0.0
      %1473 = vmatmul.mubr.f32.gmra.mrb[0].mxu0 %v1037
      %v1474 = vpop.f32.mrb[0].mxu0
      %v1475 = vadd.f32 %v1241, %v1474
      %v1476 = vpop.f32.mrb[0].mxu0
      %1477 = vmatprep.mubr.f32.mxu0 0.0
      %1478 = vmatmul.mubr.f32.gmra.mrb[0].mxu0 %v1040
      %v1479 = vpop.f32.mrb[0].mxu0
      %v1480 = vadd.f32 %v1246, %v1479
      %v1481 = vpop.f32.mrb[0].mxu0
      %1482 = vmatprep.mubr.f32.mxu0 0.0
      %1483 = vmatmul.mubr.f32.gmra.mrb[0].mxu0 %v1043
      %v1484 = vpop.f32.mrb[0].mxu0
      %v1485 = vadd.f32 %v1251, %v1484
      %v1486 = vpop.f32.mrb[0].mxu0
      %1487 = vmatprep.mubr.f32.mxu0 0.0
      %1488 = vmatmul.mubr.f32.gmra.mrb[0].mxu0 %v1046
      %v1489 = vpop.f32.mrb[0].mxu0
      %v1490 = vadd.f32 %v1256, %v1489
      %v1491 = vpop.f32.mrb[0].mxu0
      %1492 = vmatprep.mubr.f32.mxu0 0.0
      %1493 = vmatmul.mubr.f32.gmra.mrb[0].mxu0 %v1049
      %v1494 = vpop.f32.mrb[0].mxu0
      %v1495 = vadd.f32 %v1261, %v1494
      %v1496 = vpop.f32.mrb[0].mxu0
      %1497 = vmatprep.mubr.f32.mxu0 0.0
      %1498 = vmatmul.mubr.f32.gmra.mrb[0].mxu0 %v1052
      %v1499 = vpop.f32.mrb[0].mxu0
      %v1500 = vadd.f32 %v1266, %v1499
      %v1501 = vpop.f32.mrb[0].mxu0
      %1502 = vmatprep.mubr.f32.mxu0 0.0
      %1503 = vmatmul.mubr.f32.gmra.mrb[0].mxu0 %v1055
      %v1504 = vpop.f32.mrb[0].mxu0
      %v1505 = vadd.f32 %v1271, %v1504
      %v1506 = vpop.f32.mrb[0].mxu0
      %1507 = vmatprep.mubr.f32.mxu0 0.0
      %1508 = vmatmul.mubr.f32.gmra.mrb[0].mxu0 %v1058
      %v1509 = vpop.f32.mrb[0].mxu0
      %v1510 = vadd.f32 %v1276, %v1509
      %v1511 = vpop.f32.mrb[0].mxu0
      %1512 = vmatprep.mubr.f32.mxu0 0.0
      %1513 = vmatmul.mubr.f32.gmra.mrb[0].mxu0 %v1061
      %v1514 = vpop.f32.mrb[0].mxu0
      %v1515 = vadd.f32 %v1281, %v1514
      %v1516 = vpop.f32.mrb[0].mxu0
      %1517 = vmatprep.mubr.f32.mxu0 0.0
      %1518 = vmatmul.mubr.f32.gmra.mrb[0].mxu0 %v1064
      %v1519 = vpop.f32.mrb[0].mxu0
      %v1520 = vadd.f32 %v1286, %v1519
      %v1521 = vpop.f32.mrb[0].mxu0
      %1522 = vmatprep.mubr.f32.mxu0 0.0
      %1523 = vmatmul.mubr.f32.gmra.mrb[0].mxu0 %v1067
      %v1524 = vpop.f32.mrb[0].mxu0
      %v1525 = vadd.f32 %v1291, %v1524
      %v1526 = vpop.f32.mrb[0].mxu0
      %1527 = vmatprep.mubr.f32.mxu0 0.0
      %1528 = vmatmul.mubr.f32.gmra.mrb[0].mxu0 %v1070
      %v1529 = vpop.f32.mrb[0].mxu0
      %v1530 = vadd.f32 %v1296, %v1529
      %v1531 = vpop.f32.mrb[0].mxu0
      %1532 = vmatprep.mubr.f32.mxu0 0.0
      %1533 = vmatmul.mubr.f32.gmra.mrb[0].mxu0 %v1073
      %v1534 = vpop.f32.mrb[0].mxu0
      %v1535 = vadd.f32 %v1301, %v1534
      %v1536 = vpop.f32.mrb[0].mxu0
      %1537 = vmatprep.mubr.f32.mxu0 0.0
      %1538 = vmatmul.mubr.f32.gmra.mrb[0].mxu0 %v1076
      %v1539 = vpop.f32.mrb[0].mxu0
      %v1540 = vadd.f32 %v1306, %v1539
      %v1541 = vpop.f32.mrb[0].mxu0
      %1542 = vmatprep.mubr.f32.mxu0 0.0
      %1543 = vmatmul.mubr.f32.gmra.mrb[0].mxu0 %v1079
      %v1544 = vpop.f32.mrb[0].mxu0
      %v1545 = vadd.f32 %v1311, %v1544
      %v1546 = vpop.f32.mrb[0].mxu0
      %1547 = vmatprep.mubr.f32.mxu0 0.0
      %1548 = vmatmul.mubr.f32.gmra.mrb[0].mxu0 %v1082
      %v1549 = vpop.f32.mrb[0].mxu0
      %v1550 = vadd.f32 %v1316, %v1549
      %v1551 = vpop.f32.mrb[0].mxu0
      %1552 = vdwg.mxu0
      %v1554 = vlaneseq
      %v1555 = vshrl.u32 %v1554, 7
      %v1556 = vsub.s32 0, %v1555
      %v1557 = vrot.slane %v987, %v1556
      %v1559 = vadd.f32 %v1395, %v1557
      %v1560 = vadd.f32 %v1400, %v1557
      %v1561 = vadd.f32 %v1405, %v1557
      %v1562 = vadd.f32 %v1410, %v1557
      %v1563 = vadd.f32 %v1415, %v1557
      %v1564 = vadd.f32 %v1420, %v1557
      %v1565 = vadd.f32 %v1425, %v1557
      %v1566 = vadd.f32 %v1430, %v1557
      %v1567 = vadd.f32 %v1435, %v1557
      %v1568 = vadd.f32 %v1440, %v1557
      %v1569 = vadd.f32 %v1445, %v1557
      %v1570 = vadd.f32 %v1450, %v1557
      %v1571 = vadd.f32 %v1455, %v1557
      %v1572 = vadd.f32 %v1460, %v1557
      %v1573 = vadd.f32 %v1465, %v1557
      %v1574 = vadd.f32 %v1470, %v1557
      %v1575 = vadd.f32 %v1475, %v1557
      %v1576 = vadd.f32 %v1480, %v1557
      %v1577 = vadd.f32 %v1485, %v1557
      %v1578 = vadd.f32 %v1490, %v1557
      %v1579 = vadd.f32 %v1495, %v1557
      %v1580 = vadd.f32 %v1500, %v1557
      %v1581 = vadd.f32 %v1505, %v1557
      %v1582 = vadd.f32 %v1510, %v1557
      %v1583 = vadd.f32 %v1515, %v1557
      %v1584 = vadd.f32 %v1520, %v1557
      %v1585 = vadd.f32 %v1525, %v1557
      %v1586 = vadd.f32 %v1530, %v1557
      %v1587 = vadd.f32 %v1535, %v1557
      %v1588 = vadd.f32 %v1540, %v1557
      %v1589 = vadd.f32 %v1545, %v1557
      %v1590 = vadd.f32 %v1550, %v1557
      %s1591 = scalar_lea.vmem %s3, 32
      %v1592 = vld [vmem:[%s1591] sm:$0xff]
      %v1593 = vld [vmem:[%s1591 + $0x8] sm:$0xf]
      %s1594 = scalar_lea.vmem %s3, 48
      %v1595 = vld [vmem:[%s1594] sm:$0xff]
      %v1596 = vld [vmem:[%s1594 + $0x8] sm:$0xf]
      %v1598 = vsel %vm993, %v985, 0
      %v1601 = vsel %vm993, %v986, 0
      %v1604 = vsel %vm1090, %v1596, 0
      %1606 = vmatprep.subr.mxu0 0.0
      %1607 = vmatpush1.msra.mxu0 %v1595
      %1608 = vmatprep.subr.mxu0 0.0
      %1609 = vmatpush1.msra.mxu0 %v1604
      %1610 = vmatprep.subr.mxu0 0.0
      %1611 = vmatpush1.msra.mxu0 0.0
      %1612 = vmatprep.subr.mxu0 0.0
      %1613 = vmatpush1.msra.mxu0 0.0
      %1614 = vmatprep.subr.mxu0 0.0
      %1615 = vmatpush1.msra.mxu0 0.0
      %1616 = vmatprep.subr.mxu0 0.0
      %1617 = vmatpush1.msra.mxu0 0.0
      %1618 = vmatprep.subr.mxu0 0.0
      %1619 = vmatpush1.msra.mxu0 0.0
      %1620 = vmatprep.subr.mxu0 0.0
      %1621 = vmatpush1.msra.mxu0 0.0
      %1622 = vmatprep.subr.mxu0 0.0
      %1623 = vmatpush1.msra.mxu0 0.0
      %1624 = vmatprep.subr.mxu0 0.0
      %1625 = vmatpush1.msra.mxu0 0.0
      %1626 = vmatprep.subr.mxu0 0.0
      %1627 = vmatpush1.msra.mxu0 0.0
      %1628 = vmatprep.subr.mxu0 0.0
      %1629 = vmatpush1.msra.mxu0 0.0
      %1630 = vmatprep.subr.mxu0 0.0
      %1631 = vmatpush1.msra.mxu0 0.0
      %1632 = vmatprep.subr.mxu0 0.0
      %1633 = vmatpush1.msra.mxu0 0.0
      %1634 = vmatprep.subr.mxu0 0.0
      %1635 = vmatpush1.msra.mxu0 0.0
      %1636 = vmatprep.subr.mxu0 0.0
      %1637 = vmatpush1.msra.mxu0 0.0
      %1638 = vmatprep.subr.mxu0 0.0
      %1639 = vmatpush1.msra.mxu0 0.0
      %1640 = vmatprep.subr.mxu0 0.0
      %1641 = vmatpush1.msra.mxu0 0.0
      %1642 = vmatprep.subr.mxu0 0.0
      %1643 = vmatpush1.msra.mxu0 0.0
      %1644 = vmatprep.subr.mxu0 0.0
      %1645 = vmatpush1.msra.mxu0 0.0
      %1646 = vmatprep.subr.mxu0 0.0
      %1647 = vmatpush1.msra.mxu0 0.0
      %1648 = vmatprep.subr.mxu0 0.0
      %1649 = vmatpush1.msra.mxu0 0.0
      %1650 = vmatprep.subr.mxu0 0.0
      %1651 = vmatpush1.msra.mxu0 0.0
      %1652 = vmatprep.subr.mxu0 0.0
      %1653 = vmatpush1.msra.mxu0 0.0
      %1654 = vmatprep.subr.mxu0 0.0
      %1655 = vmatpush1.msra.mxu0 0.0
      %1656 = vmatprep.subr.mxu0 0.0
      %1657 = vmatpush1.msra.mxu0 0.0
      %1658 = vmatprep.subr.mxu0 0.0
      %1659 = vmatpush1.msra.mxu0 0.0
      %1660 = vmatprep.subr.mxu0 0.0
      %1661 = vmatpush1.msra.mxu0 0.0
      %1662 = vmatprep.subr.mxu0 0.0
      %1663 = vmatpush1.msra.mxu0 0.0
      %1664 = vmatprep.subr.mxu0 0.0
      %1665 = vmatpush1.msra.mxu0 0.0
      %1666 = vmatprep.subr.mxu0 0.0
      %1667 = vmatpush1.msra.mxu0 0.0
      %1668 = vmatprep.subr.mxu0 0.0
      %1669 = vmatpush1.msra.mxu0 0.0
      %1670 = vmatprep.mubr.f32.mxu0 0.0
      %1671 = vmatmul.mubr.f32.gmra.mrb[0].mxu0 %v1001
      %v1672 = vpop.f32.mrb[0].mxu0
      %v1673 = vadd.f32 0.0, %v1672
      %v1674 = vpop.f32.mrb[0].mxu0
      %1675 = vmatprep.mubr.f32.mxu0 0.0
      %1676 = vmatmul.mubr.f32.gmra.mrb[0].mxu0 %v1004
      %v1677 = vpop.f32.mrb[0].mxu0
      %v1678 = vadd.f32 0.0, %v1677
      %v1679 = vpop.f32.mrb[0].mxu0
      %1680 = vmatprep.mubr.f32.mxu0 0.0
      %1681 = vmatmul.mubr.f32.gmra.mrb[0].mxu0 %v1007
      %v1682 = vpop.f32.mrb[0].mxu0
      %v1683 = vadd.f32 0.0, %v1682
      %v1684 = vpop.f32.mrb[0].mxu0
      %1685 = vmatprep.mubr.f32.mxu0 0.0
      %1686 = vmatmul.mubr.f32.gmra.mrb[0].mxu0 %v1010
      %v1687 = vpop.f32.mrb[0].mxu0
      %v1688 = vadd.f32 0.0, %v1687
      %v1689 = vpop.f32.mrb[0].mxu0
      %1690 = vmatprep.mubr.f32.mxu0 0.0
      %1691 = vmatmul.mubr.f32.gmra.mrb[0].mxu0 %v1013
      %v1692 = vpop.f32.mrb[0].mxu0
      %v1693 = vadd.f32 0.0, %v1692
      %v1694 = vpop.f32.mrb[0].mxu0
      %1695 = vmatprep.mubr.f32.mxu0 0.0
      %1696 = vmatmul.mubr.f32.gmra.mrb[0].mxu0 %v1016
      %v1697 = vpop.f32.mrb[0].mxu0
      %v1698 = vadd.f32 0.0, %v1697
      %v1699 = vpop.f32.mrb[0].mxu0
      %1700 = vmatprep.mubr.f32.mxu0 0.0
      %1701 = vmatmul.mubr.f32.gmra.mrb[0].mxu0 %v1019
      %v1702 = vpop.f32.mrb[0].mxu0
      %v1703 = vadd.f32 0.0, %v1702
      %v1704 = vpop.f32.mrb[0].mxu0
      %1705 = vmatprep.mubr.f32.mxu0 0.0
      %1706 = vmatmul.mubr.f32.gmra.mrb[0].mxu0 %v1022
      %v1707 = vpop.f32.mrb[0].mxu0
      %v1708 = vadd.f32 0.0, %v1707
      %v1709 = vpop.f32.mrb[0].mxu0
      %1710 = vmatprep.mubr.f32.mxu0 0.0
      %1711 = vmatmul.mubr.f32.gmra.mrb[0].mxu0 %v1025
      %v1712 = vpop.f32.mrb[0].mxu0
      %v1713 = vadd.f32 0.0, %v1712
      %v1714 = vpop.f32.mrb[0].mxu0
      %1715 = vmatprep.mubr.f32.mxu0 0.0
      %1716 = vmatmul.mubr.f32.gmra.mrb[0].mxu0 %v1028
      %v1717 = vpop.f32.mrb[0].mxu0
      %v1718 = vadd.f32 0.0, %v1717
      %v1719 = vpop.f32.mrb[0].mxu0
      %1720 = vmatprep.mubr.f32.mxu0 0.0
      %1721 = vmatmul.mubr.f32.gmra.mrb[0].mxu0 %v1031
      %v1722 = vpop.f32.mrb[0].mxu0
      %v1723 = vadd.f32 0.0, %v1722
      %v1724 = vpop.f32.mrb[0].mxu0
      %1725 = vmatprep.mubr.f32.mxu0 0.0
      %1726 = vmatmul.mubr.f32.gmra.mrb[0].mxu0 %v1034
      %v1727 = vpop.f32.mrb[0].mxu0
      %v1728 = vadd.f32 0.0, %v1727
      %v1729 = vpop.f32.mrb[0].mxu0
      %1730 = vmatprep.mubr.f32.mxu0 0.0
      %1731 = vmatmul.mubr.f32.gmra.mrb[0].mxu0 %v1037
      %v1732 = vpop.f32.mrb[0].mxu0
      %v1733 = vadd.f32 0.0, %v1732
      %v1734 = vpop.f32.mrb[0].mxu0
      %1735 = vmatprep.mubr.f32.mxu0 0.0
      %1736 = vmatmul.mubr.f32.gmra.mrb[0].mxu0 %v1040
      %v1737 = vpop.f32.mrb[0].mxu0
      %v1738 = vadd.f32 0.0, %v1737
      %v1739 = vpop.f32.mrb[0].mxu0
      %1740 = vmatprep.mubr.f32.mxu0 0.0
      %1741 = vmatmul.mubr.f32.gmra.mrb[0].mxu0 %v1043
      %v1742 = vpop.f32.mrb[0].mxu0
      %v1743 = vadd.f32 0.0, %v1742
      %v1744 = vpop.f32.mrb[0].mxu0
      %1745 = vmatprep.mubr.f32.mxu0 0.0
      %1746 = vmatmul.mubr.f32.gmra.mrb[0].mxu0 %v1046
      %v1747 = vpop.f32.mrb[0].mxu0
      %v1748 = vadd.f32 0.0, %v1747
      %v1749 = vpop.f32.mrb[0].mxu0
      %1750 = vmatprep.mubr.f32.mxu0 0.0
      %1751 = vmatmul.mubr.f32.gmra.mrb[0].mxu0 %v1049
      %v1752 = vpop.f32.mrb[0].mxu0
      %v1753 = vadd.f32 0.0, %v1752
      %v1754 = vpop.f32.mrb[0].mxu0
      %1755 = vmatprep.mubr.f32.mxu0 0.0
      %1756 = vmatmul.mubr.f32.gmra.mrb[0].mxu0 %v1052
      %v1757 = vpop.f32.mrb[0].mxu0
      %v1758 = vadd.f32 0.0, %v1757
      %v1759 = vpop.f32.mrb[0].mxu0
      %1760 = vmatprep.mubr.f32.mxu0 0.0
      %1761 = vmatmul.mubr.f32.gmra.mrb[0].mxu0 %v1055
      %v1762 = vpop.f32.mrb[0].mxu0
      %v1763 = vadd.f32 0.0, %v1762
      %v1764 = vpop.f32.mrb[0].mxu0
      %1765 = vmatprep.mubr.f32.mxu0 0.0
      %1766 = vmatmul.mubr.f32.gmra.mrb[0].mxu0 %v1058
      %v1767 = vpop.f32.mrb[0].mxu0
      %v1768 = vadd.f32 0.0, %v1767
      %v1769 = vpop.f32.mrb[0].mxu0
      %1770 = vmatprep.mubr.f32.mxu0 0.0
      %1771 = vmatmul.mubr.f32.gmra.mrb[0].mxu0 %v1061
      %v1772 = vpop.f32.mrb[0].mxu0
      %v1773 = vadd.f32 0.0, %v1772
      %v1774 = vpop.f32.mrb[0].mxu0
      %1775 = vmatprep.mubr.f32.mxu0 0.0
      %1776 = vmatmul.mubr.f32.gmra.mrb[0].mxu0 %v1064
      %v1777 = vpop.f32.mrb[0].mxu0
      %v1778 = vadd.f32 0.0, %v1777
      %v1779 = vpop.f32.mrb[0].mxu0
      %1780 = vmatprep.mubr.f32.mxu0 0.0
      %1781 = vmatmul.mubr.f32.gmra.mrb[0].mxu0 %v1067
      %v1782 = vpop.f32.mrb[0].mxu0
      %v1783 = vadd.f32 0.0, %v1782
      %v1784 = vpop.f32.mrb[0].mxu0
      %1785 = vmatprep.mubr.f32.mxu0 0.0
      %1786 = vmatmul.mubr.f32.gmra.mrb[0].mxu0 %v1070
      %v1787 = vpop.f32.mrb[0].mxu0
      %v1788 = vadd.f32 0.0, %v1787
      %v1789 = vpop.f32.mrb[0].mxu0
      %1790 = vmatprep.mubr.f32.mxu0 0.0
      %1791 = vmatmul.mubr.f32.gmra.mrb[0].mxu0 %v1073
      %v1792 = vpop.f32.mrb[0].mxu0
      %v1793 = vadd.f32 0.0, %v1792
      %v1794 = vpop.f32.mrb[0].mxu0
      %1795 = vmatprep.mubr.f32.mxu0 0.0
      %1796 = vmatmul.mubr.f32.gmra.mrb[0].mxu0 %v1076
      %v1797 = vpop.f32.mrb[0].mxu0
      %v1798 = vadd.f32 0.0, %v1797
      %v1799 = vpop.f32.mrb[0].mxu0
      %1800 = vmatprep.mubr.f32.mxu0 0.0
      %1801 = vmatmul.mubr.f32.gmra.mrb[0].mxu0 %v1079
      %v1802 = vpop.f32.mrb[0].mxu0
      %v1803 = vadd.f32 0.0, %v1802
      %v1804 = vpop.f32.mrb[0].mxu0
      %1805 = vmatprep.mubr.f32.mxu0 0.0
      %1806 = vmatmul.mubr.f32.gmra.mrb[0].mxu0 %v1082
      %v1807 = vpop.f32.mrb[0].mxu0
      %v1808 = vadd.f32 0.0, %v1807
      %v1809 = vpop.f32.mrb[0].mxu0
      %1810 = vmatprep.mubr.f32.mxu0 0.0
      %1811 = vmatmul.mubr.f32.gmra.mrb[0].mxu0 %v1085
      %v1812 = vpop.f32.mrb[0].mxu0
      %v1813 = vadd.f32 0.0, %v1812
      %v1814 = vpop.f32.mrb[0].mxu0
      %1815 = vmatprep.mubr.f32.mxu0 0.0
      %1816 = vmatmul.mubr.f32.gmra.mrb[0].mxu0 %v1088
      %v1817 = vpop.f32.mrb[0].mxu0
      %v1818 = vadd.f32 0.0, %v1817
      %v1819 = vpop.f32.mrb[0].mxu0
      %1820 = vmatprep.mubr.f32.mxu0 0.0
      %1821 = vmatmul.mubr.f32.gmra.mrb[0].mxu0 %v1598
      %v1822 = vpop.f32.mrb[0].mxu0
      %v1823 = vadd.f32 0.0, %v1822
      %v1824 = vpop.f32.mrb[0].mxu0
      %1825 = vmatprep.mubr.f32.mxu0 0.0
      %1826 = vmatmul.mubr.f32.gmra.mrb[0].mxu0 %v1601
      %v1827 = vpop.f32.mrb[0].mxu0
      %v1828 = vadd.f32 0.0, %v1827
      %v1829 = vpop.f32.mrb[0].mxu0
      %1830 = vdwg.mxu0
      %v1832 = vsel %vm1090, %v1593, 0
      %1834 = vmatprep.subr.mxu0 0.0
      %1835 = vmatpush1.msra.mxu0 %v1592
      %1836 = vmatprep.subr.mxu0 0.0
      %1837 = vmatpush1.msra.mxu0 %v1832
      %1838 = vmatprep.subr.mxu0 0.0
      %1839 = vmatpush1.msra.mxu0 0.0
      %1840 = vmatprep.subr.mxu0 0.0
      %1841 = vmatpush1.msra.mxu0 0.0
      %1842 = vmatprep.subr.mxu0 0.0
      %1843 = vmatpush1.msra.mxu0 0.0
      %1844 = vmatprep.subr.mxu0 0.0
      %1845 = vmatpush1.msra.mxu0 0.0
      %1846 = vmatprep.subr.mxu0 0.0
      %1847 = vmatpush1.msra.mxu0 0.0
      %1848 = vmatprep.subr.mxu0 0.0
      %1849 = vmatpush1.msra.mxu0 0.0
      %1850 = vmatprep.subr.mxu0 0.0
      %1851 = vmatpush1.msra.mxu0 0.0
      %1852 = vmatprep.subr.mxu0 0.0
      %1853 = vmatpush1.msra.mxu0 0.0
      %1854 = vmatprep.subr.mxu0 0.0
      %1855 = vmatpush1.msra.mxu0 0.0
      %1856 = vmatprep.subr.mxu0 0.0
      %1857 = vmatpush1.msra.mxu0 0.0
      %1858 = vmatprep.subr.mxu0 0.0
      %1859 = vmatpush1.msra.mxu0 0.0
      %1860 = vmatprep.subr.mxu0 0.0
      %1861 = vmatpush1.msra.mxu0 0.0
      %1862 = vmatprep.subr.mxu0 0.0
      %1863 = vmatpush1.msra.mxu0 0.0
      %1864 = vmatprep.subr.mxu0 0.0
      %1865 = vmatpush1.msra.mxu0 0.0
      %1866 = vmatprep.subr.mxu0 0.0
      %1867 = vmatpush1.msra.mxu0 0.0
      %1868 = vmatprep.subr.mxu0 0.0
      %1869 = vmatpush1.msra.mxu0 0.0
      %1870 = vmatprep.subr.mxu0 0.0
      %1871 = vmatpush1.msra.mxu0 0.0
      %1872 = vmatprep.subr.mxu0 0.0
      %1873 = vmatpush1.msra.mxu0 0.0
      %1874 = vmatprep.subr.mxu0 0.0
      %1875 = vmatpush1.msra.mxu0 0.0
      %1876 = vmatprep.subr.mxu0 0.0
      %1877 = vmatpush1.msra.mxu0 0.0
      %1878 = vmatprep.subr.mxu0 0.0
      %1879 = vmatpush1.msra.mxu0 0.0
      %1880 = vmatprep.subr.mxu0 0.0
      %1881 = vmatpush1.msra.mxu0 0.0
      %1882 = vmatprep.subr.mxu0 0.0
      %1883 = vmatpush1.msra.mxu0 0.0
      %1884 = vmatprep.subr.mxu0 0.0
      %1885 = vmatpush1.msra.mxu0 0.0
      %1886 = vmatprep.subr.mxu0 0.0
      %1887 = vmatpush1.msra.mxu0 0.0
      %1888 = vmatprep.subr.mxu0 0.0
      %1889 = vmatpush1.msra.mxu0 0.0
      %1890 = vmatprep.subr.mxu0 0.0
      %1891 = vmatpush1.msra.mxu0 0.0
      %1892 = vmatprep.subr.mxu0 0.0
      %1893 = vmatpush1.msra.mxu0 0.0
      %1894 = vmatprep.subr.mxu0 0.0
      %1895 = vmatpush1.msra.mxu0 0.0
      %1896 = vmatprep.subr.mxu0 0.0
      %1897 = vmatpush1.msra.mxu0 0.0
      %1898 = vmatprep.mubr.f32.mxu0 0.0
      %1899 = vmatmul.mubr.f32.gmra.mrb[0].mxu0 %v995
      %v1900 = vpop.f32.mrb[0].mxu0
      %v1901 = vadd.f32 %v1673, %v1900
      %v1902 = vpop.f32.mrb[0].mxu0
      %1903 = vmatprep.mubr.f32.mxu0 0.0
      %1904 = vmatmul.mubr.f32.gmra.mrb[0].mxu0 %v998
      %v1905 = vpop.f32.mrb[0].mxu0
      %v1906 = vadd.f32 %v1678, %v1905
      %v1907 = vpop.f32.mrb[0].mxu0
      %1908 = vmatprep.mubr.f32.mxu0 0.0
      %1909 = vmatmul.mubr.f32.gmra.mrb[0].mxu0 %v1001
      %v1910 = vpop.f32.mrb[0].mxu0
      %v1911 = vadd.f32 %v1683, %v1910
      %v1912 = vpop.f32.mrb[0].mxu0
      %1913 = vmatprep.mubr.f32.mxu0 0.0
      %1914 = vmatmul.mubr.f32.gmra.mrb[0].mxu0 %v1004
      %v1915 = vpop.f32.mrb[0].mxu0
      %v1916 = vadd.f32 %v1688, %v1915
      %v1917 = vpop.f32.mrb[0].mxu0
      %1918 = vmatprep.mubr.f32.mxu0 0.0
      %1919 = vmatmul.mubr.f32.gmra.mrb[0].mxu0 %v1007
      %v1920 = vpop.f32.mrb[0].mxu0
      %v1921 = vadd.f32 %v1693, %v1920
      %v1922 = vpop.f32.mrb[0].mxu0
      %1923 = vmatprep.mubr.f32.mxu0 0.0
      %1924 = vmatmul.mubr.f32.gmra.mrb[0].mxu0 %v1010
      %v1925 = vpop.f32.mrb[0].mxu0
      %v1926 = vadd.f32 %v1698, %v1925
      %v1927 = vpop.f32.mrb[0].mxu0
      %1928 = vmatprep.mubr.f32.mxu0 0.0
      %1929 = vmatmul.mubr.f32.gmra.mrb[0].mxu0 %v1013
      %v1930 = vpop.f32.mrb[0].mxu0
      %v1931 = vadd.f32 %v1703, %v1930
      %v1932 = vpop.f32.mrb[0].mxu0
      %1933 = vmatprep.mubr.f32.mxu0 0.0
      %1934 = vmatmul.mubr.f32.gmra.mrb[0].mxu0 %v1016
      %v1935 = vpop.f32.mrb[0].mxu0
      %v1936 = vadd.f32 %v1708, %v1935
      %v1937 = vpop.f32.mrb[0].mxu0
      %1938 = vmatprep.mubr.f32.mxu0 0.0
      %1939 = vmatmul.mubr.f32.gmra.mrb[0].mxu0 %v1019
      %v1940 = vpop.f32.mrb[0].mxu0
      %v1941 = vadd.f32 %v1713, %v1940
      %v1942 = vpop.f32.mrb[0].mxu0
      %1943 = vmatprep.mubr.f32.mxu0 0.0
      %1944 = vmatmul.mubr.f32.gmra.mrb[0].mxu0 %v1022
      %v1945 = vpop.f32.mrb[0].mxu0
      %v1946 = vadd.f32 %v1718, %v1945
      %v1947 = vpop.f32.mrb[0].mxu0
      %1948 = vmatprep.mubr.f32.mxu0 0.0
      %1949 = vmatmul.mubr.f32.gmra.mrb[0].mxu0 %v1025
      %v1950 = vpop.f32.mrb[0].mxu0
      %v1951 = vadd.f32 %v1723, %v1950
      %v1952 = vpop.f32.mrb[0].mxu0
      %1953 = vmatprep.mubr.f32.mxu0 0.0
      %1954 = vmatmul.mubr.f32.gmra.mrb[0].mxu0 %v1028
      %v1955 = vpop.f32.mrb[0].mxu0
      %v1956 = vadd.f32 %v1728, %v1955
      %v1957 = vpop.f32.mrb[0].mxu0
      %1958 = vmatprep.mubr.f32.mxu0 0.0
      %1959 = vmatmul.mubr.f32.gmra.mrb[0].mxu0 %v1031
      %v1960 = vpop.f32.mrb[0].mxu0
      %v1961 = vadd.f32 %v1733, %v1960
      %v1962 = vpop.f32.mrb[0].mxu0
      %1963 = vmatprep.mubr.f32.mxu0 0.0
      %1964 = vmatmul.mubr.f32.gmra.mrb[0].mxu0 %v1034
      %v1965 = vpop.f32.mrb[0].mxu0
      %v1966 = vadd.f32 %v1738, %v1965
      %v1967 = vpop.f32.mrb[0].mxu0
      %1968 = vmatprep.mubr.f32.mxu0 0.0
      %1969 = vmatmul.mubr.f32.gmra.mrb[0].mxu0 %v1037
      %v1970 = vpop.f32.mrb[0].mxu0
      %v1971 = vadd.f32 %v1743, %v1970
      %v1972 = vpop.f32.mrb[0].mxu0
      %1973 = vmatprep.mubr.f32.mxu0 0.0
      %1974 = vmatmul.mubr.f32.gmra.mrb[0].mxu0 %v1040
      %v1975 = vpop.f32.mrb[0].mxu0
      %v1976 = vadd.f32 %v1748, %v1975
      %v1977 = vpop.f32.mrb[0].mxu0
      %1978 = vmatprep.mubr.f32.mxu0 0.0
      %1979 = vmatmul.mubr.f32.gmra.mrb[0].mxu0 %v1043
      %v1980 = vpop.f32.mrb[0].mxu0
      %v1981 = vadd.f32 %v1753, %v1980
      %v1982 = vpop.f32.mrb[0].mxu0
      %1983 = vmatprep.mubr.f32.mxu0 0.0
      %1984 = vmatmul.mubr.f32.gmra.mrb[0].mxu0 %v1046
      %v1985 = vpop.f32.mrb[0].mxu0
      %v1986 = vadd.f32 %v1758, %v1985
      %v1987 = vpop.f32.mrb[0].mxu0
      %1988 = vmatprep.mubr.f32.mxu0 0.0
      %1989 = vmatmul.mubr.f32.gmra.mrb[0].mxu0 %v1049
      %v1990 = vpop.f32.mrb[0].mxu0
      %v1991 = vadd.f32 %v1763, %v1990
      %v1992 = vpop.f32.mrb[0].mxu0
      %1993 = vmatprep.mubr.f32.mxu0 0.0
      %1994 = vmatmul.mubr.f32.gmra.mrb[0].mxu0 %v1052
      %v1995 = vpop.f32.mrb[0].mxu0
      %v1996 = vadd.f32 %v1768, %v1995
      %v1997 = vpop.f32.mrb[0].mxu0
      %1998 = vmatprep.mubr.f32.mxu0 0.0
      %1999 = vmatmul.mubr.f32.gmra.mrb[0].mxu0 %v1055
      %v2000 = vpop.f32.mrb[0].mxu0
      %v2001 = vadd.f32 %v1773, %v2000
      %v2002 = vpop.f32.mrb[0].mxu0
      %2003 = vmatprep.mubr.f32.mxu0 0.0
      %2004 = vmatmul.mubr.f32.gmra.mrb[0].mxu0 %v1058
      %v2005 = vpop.f32.mrb[0].mxu0
      %v2006 = vadd.f32 %v1778, %v2005
      %v2007 = vpop.f32.mrb[0].mxu0
      %2008 = vmatprep.mubr.f32.mxu0 0.0
      %2009 = vmatmul.mubr.f32.gmra.mrb[0].mxu0 %v1061
      %v2010 = vpop.f32.mrb[0].mxu0
      %v2011 = vadd.f32 %v1783, %v2010
      %v2012 = vpop.f32.mrb[0].mxu0
      %2013 = vmatprep.mubr.f32.mxu0 0.0
      %2014 = vmatmul.mubr.f32.gmra.mrb[0].mxu0 %v1064
      %v2015 = vpop.f32.mrb[0].mxu0
      %v2016 = vadd.f32 %v1788, %v2015
      %v2017 = vpop.f32.mrb[0].mxu0
      %2018 = vmatprep.mubr.f32.mxu0 0.0
      %2019 = vmatmul.mubr.f32.gmra.mrb[0].mxu0 %v1067
      %v2020 = vpop.f32.mrb[0].mxu0
      %v2021 = vadd.f32 %v1793, %v2020
      %v2022 = vpop.f32.mrb[0].mxu0
      %2023 = vmatprep.mubr.f32.mxu0 0.0
      %2024 = vmatmul.mubr.f32.gmra.mrb[0].mxu0 %v1070
      %v2025 = vpop.f32.mrb[0].mxu0
      %v2026 = vadd.f32 %v1798, %v2025
      %v2027 = vpop.f32.mrb[0].mxu0
      %2028 = vmatprep.mubr.f32.mxu0 0.0
      %2029 = vmatmul.mubr.f32.gmra.mrb[0].mxu0 %v1073
      %v2030 = vpop.f32.mrb[0].mxu0
      %v2031 = vadd.f32 %v1803, %v2030
      %v2032 = vpop.f32.mrb[0].mxu0
      %2033 = vmatprep.mubr.f32.mxu0 0.0
      %2034 = vmatmul.mubr.f32.gmra.mrb[0].mxu0 %v1076
      %v2035 = vpop.f32.mrb[0].mxu0
      %v2036 = vadd.f32 %v1808, %v2035
      %v2037 = vpop.f32.mrb[0].mxu0
      %2038 = vmatprep.mubr.f32.mxu0 0.0
      %2039 = vmatmul.mubr.f32.gmra.mrb[0].mxu0 %v1079
      %v2040 = vpop.f32.mrb[0].mxu0
      %v2041 = vadd.f32 %v1813, %v2040
      %v2042 = vpop.f32.mrb[0].mxu0
      %2043 = vmatprep.mubr.f32.mxu0 0.0
      %2044 = vmatmul.mubr.f32.gmra.mrb[0].mxu0 %v1082
      %v2045 = vpop.f32.mrb[0].mxu0
      %v2046 = vadd.f32 %v1818, %v2045
      %v2047 = vpop.f32.mrb[0].mxu0
      %2048 = vmatprep.mubr.f32.mxu0 0.0
      %2049 = vmatmul.mubr.f32.gmra.mrb[0].mxu0 %v1085
      %v2050 = vpop.f32.mrb[0].mxu0
      %v2051 = vadd.f32 %v1823, %v2050
      %v2052 = vpop.f32.mrb[0].mxu0
      %2053 = vmatprep.mubr.f32.mxu0 0.0
      %2054 = vmatmul.mubr.f32.gmra.mrb[0].mxu0 %v1088
      %v2055 = vpop.f32.mrb[0].mxu0
      %v2056 = vadd.f32 %v1828, %v2055
      %v2057 = vpop.f32.mrb[0].mxu0
      %2058 = vdwg.mxu0
      %v2059 = vadd.f32 %v1901, %v1557
      %v2060 = vadd.f32 %v1906, %v1557
      %v2061 = vadd.f32 %v1911, %v1557
      %v2062 = vadd.f32 %v1916, %v1557
      %v2063 = vadd.f32 %v1921, %v1557
      %v2064 = vadd.f32 %v1926, %v1557
      %v2065 = vadd.f32 %v1931, %v1557
      %v2066 = vadd.f32 %v1936, %v1557
      %v2067 = vadd.f32 %v1941, %v1557
      %v2068 = vadd.f32 %v1946, %v1557
      %v2069 = vadd.f32 %v1951, %v1557
      %v2070 = vadd.f32 %v1956, %v1557
      %v2071 = vadd.f32 %v1961, %v1557
      %v2072 = vadd.f32 %v1966, %v1557
      %v2073 = vadd.f32 %v1971, %v1557
      %v2074 = vadd.f32 %v1976, %v1557
      %v2075 = vadd.f32 %v1981, %v1557
      %v2076 = vadd.f32 %v1986, %v1557
      %v2077 = vadd.f32 %v1991, %v1557
      %v2078 = vadd.f32 %v1996, %v1557
      %v2079 = vadd.f32 %v2001, %v1557
      %v2080 = vadd.f32 %v2006, %v1557
      %v2081 = vadd.f32 %v2011, %v1557
      %v2082 = vadd.f32 %v2016, %v1557
      %v2083 = vadd.f32 %v2021, %v1557
      %v2084 = vadd.f32 %v2026, %v1557
      %v2085 = vadd.f32 %v2031, %v1557
      %v2086 = vadd.f32 %v2036, %v1557
      %v2087 = vadd.f32 %v2041, %v1557
      %v2088 = vadd.f32 %v2046, %v1557
      %v2089 = vadd.f32 %v2051, %v1557
      %v2090 = vadd.f32 %v2056, %v1557
      %2091 = vst.msk [vmem:[%s391] sm:$0xff] %vm950, %v1559
      %2092 = vst.msk [vmem:[%s391 + $0x8] sm:$0xff] %vm950, %v1560
      %2093 = vst.msk [vmem:[%s391 + $0x10] sm:$0xff] %vm950, %v2059
      %2094 = vst.msk [vmem:[%s391 + $0x18] sm:$0xff] %vm950, %v2060
      %2095 = vst.msk [vmem:[%s391 + $0x20] sm:$0xff] %vm950, %v1561
      %2096 = vst.msk [vmem:[%s391 + $0x28] sm:$0xff] %vm950, %v1562
      %2097 = vst.msk [vmem:[%s391 + $0x30] sm:$0xff] %vm950, %v2061
      %2098 = vst.msk [vmem:[%s391 + $0x38] sm:$0xff] %vm950, %v2062
      %2099 = vst.msk [vmem:[%s391 + $0x40] sm:$0xff] %vm950, %v1563
      %2100 = vst.msk [vmem:[%s391 + $0x48] sm:$0xff] %vm950, %v1564
      %2101 = vst.msk [vmem:[%s391 + $0x50] sm:$0xff] %vm950, %v2063
      %2102 = vst.msk [vmem:[%s391 + $0x58] sm:$0xff] %vm950, %v2064
      %2103 = vst.msk [vmem:[%s391 + $0x60] sm:$0xff] %vm950, %v1565
      %2104 = vst.msk [vmem:[%s391 + $0x68] sm:$0xff] %vm950, %v1566
      %2105 = vst.msk [vmem:[%s391 + $0x70] sm:$0xff] %vm950, %v2065
      %2106 = vst.msk [vmem:[%s391 + $0x78] sm:$0xff] %vm950, %v2066
      %2107 = vst.msk [vmem:[%s391 + $0x80] sm:$0xff] %vm950, %v1567
      %2108 = vst.msk [vmem:[%s391 + $0x88] sm:$0xff] %vm950, %v1568
      %2109 = vst.msk [vmem:[%s391 + $0x90] sm:$0xff] %vm950, %v2067
      %2110 = vst.msk [vmem:[%s391 + $0x98] sm:$0xff] %vm950, %v2068
      %2111 = vst.msk [vmem:[%s391 + $0xa0] sm:$0xff] %vm950, %v1569
      %2112 = vst.msk [vmem:[%s391 + $0xa8] sm:$0xff] %vm950, %v1570
      %2113 = vst.msk [vmem:[%s391 + $0xb0] sm:$0xff] %vm950, %v2069
      %2114 = vst.msk [vmem:[%s391 + $0xb8] sm:$0xff] %vm950, %v2070
      %2115 = vst.msk [vmem:[%s391 + $0xc0] sm:$0xff] %vm950, %v1571
      %2116 = vst.msk [vmem:[%s391 + $0xc8] sm:$0xff] %vm950, %v1572
      %2117 = vst.msk [vmem:[%s391 + $0xd0] sm:$0xff] %vm950, %v2071
      %2118 = vst.msk [vmem:[%s391 + $0xd8] sm:$0xff] %vm950, %v2072
      %2119 = vst.msk [vmem:[%s391 + $0xe0] sm:$0xff] %vm950, %v1573
      %2120 = vst.msk [vmem:[%s391 + $0xe8] sm:$0xff] %vm950, %v1574
      %2121 = vst.msk [vmem:[%s391 + $0xf0] sm:$0xff] %vm950, %v2073
      %2122 = vst.msk [vmem:[%s391 + $0xf8] sm:$0xff] %vm950, %v2074
      %2123 = vst.msk [vmem:[%s391 + $0x100] sm:$0xff] %vm950, %v1575
      %2124 = vst.msk [vmem:[%s391 + $0x108] sm:$0xff] %vm950, %v1576
      %2125 = vst.msk [vmem:[%s391 + $0x110] sm:$0xff] %vm950, %v2075
      %2126 = vst.msk [vmem:[%s391 + $0x118] sm:$0xff] %vm950, %v2076
      %2127 = vst.msk [vmem:[%s391 + $0x120] sm:$0xff] %vm950, %v1577
      %2128 = vst.msk [vmem:[%s391 + $0x128] sm:$0xff] %vm950, %v1578
      %2129 = vst.msk [vmem:[%s391 + $0x130] sm:$0xff] %vm950, %v2077
      %2130 = vst.msk [vmem:[%s391 + $0x138] sm:$0xff] %vm950, %v2078
      %2131 = vst.msk [vmem:[%s391 + $0x140] sm:$0xff] %vm950, %v1579
      %2132 = vst.msk [vmem:[%s391 + $0x148] sm:$0xff] %vm950, %v1580
      %2133 = vst.msk [vmem:[%s391 + $0x150] sm:$0xff] %vm950, %v2079
      %2134 = vst.msk [vmem:[%s391 + $0x158] sm:$0xff] %vm950, %v2080
      %2135 = vst.msk [vmem:[%s391 + $0x160] sm:$0xff] %vm950, %v1581
      %2136 = vst.msk [vmem:[%s391 + $0x168] sm:$0xff] %vm950, %v1582
      %2137 = vst.msk [vmem:[%s391 + $0x170] sm:$0xff] %vm950, %v2081
      %2138 = vst.msk [vmem:[%s391 + $0x178] sm:$0xff] %vm950, %v2082
      %2139 = vst.msk [vmem:[%s391 + $0x180] sm:$0xff] %vm950, %v1583
      %2140 = vst.msk [vmem:[%s391 + $0x188] sm:$0xff] %vm950, %v1584
      %2141 = vst.msk [vmem:[%s391 + $0x190] sm:$0xff] %vm950, %v2083
      %2142 = vst.msk [vmem:[%s391 + $0x198] sm:$0xff] %vm950, %v2084
      %2143 = vst.msk [vmem:[%s391 + $0x1a0] sm:$0xff] %vm950, %v1585
      %2144 = vst.msk [vmem:[%s391 + $0x1a8] sm:$0xff] %vm950, %v1586
      %2145 = vst.msk [vmem:[%s391 + $0x1b0] sm:$0xff] %vm950, %v2085
      %2146 = vst.msk [vmem:[%s391 + $0x1b8] sm:$0xff] %vm950, %v2086
      %2147 = vst.msk [vmem:[%s391 + $0x1c0] sm:$0xff] %vm950, %v1587
      %2148 = vst.msk [vmem:[%s391 + $0x1c8] sm:$0xff] %vm950, %v1588
      %2149 = vst.msk [vmem:[%s391 + $0x1d0] sm:$0xff] %vm950, %v2087
      %2150 = vst.msk [vmem:[%s391 + $0x1d8] sm:$0xff] %vm950, %v2088
      %2151 = vst.msk [vmem:[%s391 + $0x1e0] sm:$0xff] %vm950, %v1589
      %2152 = vst.msk [vmem:[%s391 + $0x1e8] sm:$0xff] %vm950, %v1590
      %2153 = vst.msk [vmem:[%s391 + $0x1f0] sm:$0xff] %vm950, %v2089
      %2154 = vst.msk [vmem:[%s391 + $0x1f8] sm:$0xff] %vm950, %v2090
      %s2155 = smul.u32 32, %s21
      %p2156 = scmp.lt.s32.totalorder %s20, 1
      %s2157 = scalar_select %p2156, %s20, 1
      %p2158 = scmp.lt.s32.totalorder %s2155, 31
      %s2159 = scalar_select %p2158, %s2155, 31
      %s2160 = smul.addr %s2159, 2
      %s2161 = smul.addr %s2157, 64
      %s2162 = sadd.s32 %s2160, %s2161
      %s2163 = smul.addr %s2162, 8
      %s2164 = scalar_lea.vmem %s5, %s2163
      // Predicated region
      $region41: #{tpu_custom_call.1} parent=39 // pred_check
        %p2165 = pneg %p190
      $region42: #{tpu_custom_call.1} parent=39 // pred_check_branch
        %2167 = sbr.rel (%p2165) target = $region44
      $region43: #{tpu_custom_call.1} parent=39 // pred_region
        %s2168 = smul.u32 32, %s21
      $region44: #{tpu_custom_call.1} parent=39 // pred_fallthru
        _
    $region40: #{tpu_custom_call.1} parent=5 // pred_fallthru
      _
    %p2169 = scmp.le.s32.totalorder 2, %s11
    // Predicated region
    $region45: #{tpu_custom_call.1} parent=5 // pred_check
      %p2170 = pneg %p2169
    $region46: #{tpu_custom_call.1} parent=5 // pred_check_branch
      %2172 = sbr.rel (%p2170) target = $region48
    $region47: #{tpu_custom_call.1} parent=5 // pred_region
      %s2173 = ssub.s32 %s11, 2
      // Predicated region
      $region49: #{tpu_custom_call.1} parent=47 // pred_check
        %p2174 = pneg %p196
      $region50: #{tpu_custom_call.1} parent=47 // pred_check_branch
        %2176 = sbr.rel (%p2174) target = $region52
      $region51: #{tpu_custom_call.1} parent=47 // pred_region
        %s2177 = smul.u32 32, %s23
        %p2178 = scmp.lt.s32.totalorder %s22, 1
        %s2179 = scalar_select %p2178, %s22, 1
        %p2180 = scmp.lt.s32.totalorder %s2177, 31
        %s2181 = scalar_select %p2180, %s2177, 31
        %s2182 = smul.addr %s2181, 2
        %s2183 = smul.addr %s2179, 64
        %s2184 = sadd.s32 %s2182, %s2183
        %s2185 = smul.addr %s2184, 8
        %s2186 = scalar_lea.vmem %s5, %s2185
      $region52: #{tpu_custom_call.1} parent=47 // pred_fallthru
        _
    $region48: #{tpu_custom_call.1} parent=5 // pred_fallthru
      _
  $region6: #{tpu_custom_call.1} parent=0 // loop_footer
    %s15 = sadd.s32 1, %s11
  $region7: #{tpu_custom_call.1} parent=0 // loop_footer_branch
    %10 = sbr.rel target = $region3
  $region8: #{tpu_custom_call.1} parent=0 // loop_exit
    _

</llo_original>
